<compile_context>
chip_gen: v6e
topology: v6e:2x2x1
jax: 0.10.0
libtpu: 0.0.40
codegen_flags: <defaults>
</compile_context>

<pallas_src>
import functools

import jax
import jax.numpy as jnp
from jax.experimental import pallas as pl
from jax.experimental.pallas import tpu as pltpu


# --------------------------------------------------------------------------
# Fused Pallas kernel: whole Detail_path for one batch element per grid step.
# --------------------------------------------------------------------------
def _detail_path_kernel(p_ref, w01_ref, b01_ref, w2_ref, b2_ref, w3_ref,
                        b3_ref, o_ref, h1p_ref, h2p_ref, *, Ho, Wo):
    f32 = jnp.float32
    M1 = Ho * Wo

    # ---- Stage 1: conv1 (3->32, BN+ReLU) and shortcut (3->128, BN) share the
    #      same 27-column stride-2 patches -> one merged (27, 160) matmul.
    p = p_ref[0].reshape(M1, 27)                                    # bf16
    y01 = jnp.dot(p, w01_ref[...], preferred_element_type=f32) + b01_ref[...]
    res = y01[:, :128]                                              # shortcut, f32, stays in VMEM
    h1 = jnp.maximum(y01[:, 128:], 0.0).astype(jnp.bfloat16)        # (M1, 32)

    # ---- Stage 2: conv2 (32->64, BN+ReLU).  Patches are built in VMEM from a
    #      zero-padded scratch slab; nothing round-trips HBM.
    h1p_ref[...] = jnp.zeros_like(h1p_ref)
    h1p_ref[1:Ho + 1, 1:Wo + 1, :] = h1.reshape(Ho, Wo, 32)
    p2 = jnp.concatenate(
        [h1p_ref[kh:kh + Ho, kw:kw + Wo, :].reshape(M1, 32)
         for kh in range(3) for kw in range(3)], axis=-1)           # (M1, 288) bf16
    h2 = jnp.dot(p2, w2_ref[...], preferred_element_type=f32) + b2_ref[...]
    h2 = jnp.maximum(h2, 0.0).astype(jnp.bfloat16)                  # (M1, 64)

    # ---- Stage 3: conv3 (64->128, BN) fused with residual add + final ReLU.
    h2p_ref[...] = jnp.zeros_like(h2p_ref)
    h2p_ref[1:Ho + 1, 1:Wo + 1, :] = h2.reshape(Ho, Wo, 64)
    p3 = jnp.concatenate(
        [h2p_ref[kh:kh + Ho, kw:kw + Wo, :].reshape(M1, 64)
         for kh in range(3) for kw in range(3)], axis=-1)           # (M1, 576) bf16
    y3 = jnp.dot(p3, w3_ref[...], preferred_element_type=f32) + b3_ref[...]
    out = jnp.maximum(y3 + res, 0.0)
    o_ref[...] = out.reshape(1, Ho, Wo, 128).astype(o_ref.dtype)


# --------------------------------------------------------------------------
# Layout plumbing (wrapper-side, tiny constants / 3-channel input only)
# --------------------------------------------------------------------------
def _im2col_3x3(x_nhwc, stride):
    """(B,H,W,C) -> (B,Ho,Wo,9*C) 3x3 patches with padding 1."""
    B, H, W, C = x_nhwc.shape
    xp = jnp.pad(x_nhwc, ((0, 0), (1, 1), (1, 1), (0, 0)))
    Ho = (H - 1) // stride + 1
    Wo = (W - 1) // stride + 1
    cols = []
    for kh in range(3):
        for kw in range(3):
            cols.append(xp[:, kh:kh + (Ho - 1) * stride + 1:stride,
                              kw:kw + (Wo - 1) * stride + 1:stride, :])
    return jnp.concatenate(cols, axis=-1)


def _w_to_mat(w_oihw):
    """PyTorch OIHW (Cout,Cin,3,3) -> (9*Cin, Cout) matching im2col ordering."""
    cout, cin = w_oihw.shape[0], w_oihw.shape[1]
    return jnp.transpose(w_oihw, (2, 3, 1, 0)).reshape(9 * cin, cout)


def _fold_bn(gamma, beta, mean, var, eps=1e-5):
    scale = gamma / jnp.sqrt(var + eps)
    bias = beta - mean * scale
    return scale, bias


# --------------------------------------------------------------------------
# Detail_path forward
# --------------------------------------------------------------------------
def detail_path_forward(x, params):
    """x: (B, 3, H, W) NCHW float32.  Returns (B, 128, ceil(H/2), ceil(W/2))."""
    B = x.shape[0]
    x_nhwc = jnp.transpose(x, (0, 2, 3, 1))

    # Stride-2 patches of the 3-channel input (shared by conv1 and shortcut).
    # This tensor is tiny (27 columns) so building it wrapper-side is cheap;
    # the fat conv2/conv3 patches are built inside the kernel.
    p_in = _im2col_3x3(x_nhwc, stride=2)                 # (B, Ho, Wo, 27)
    _, Ho, Wo, _ = p_in.shape
    p_in = p_in.astype(jnp.bfloat16)

    # Fold BN scale into the weight columns; keep only a bias add in-kernel.
    s1, b1 = _fold_bn(*params["left_bn1"])
    s2, b2 = _fold_bn(*params["left_bn2"])
    s3, b3 = _fold_bn(*params["left_bn3"])
    ssc, bsc = _fold_bn(*params["short_bn"])

    w1 = _w_to_mat(params["left_conv1_w"]) * s1[None, :]     # (27, 32)
    w2 = _w_to_mat(params["left_conv2_w"]) * s2[None, :]     # (288, 64)
    w3 = _w_to_mat(params["left_conv3_w"]) * s3[None, :]     # (576, 128)
    wsc = _w_to_mat(params["short_conv_w"]) * ssc[None, :]   # (27, 128)

    # Shortcut first so both result slices land on 128-lane boundaries.
    w01 = jnp.concatenate([wsc, w1], axis=1).astype(jnp.bfloat16)   # (27, 160)
    b01 = jnp.concatenate([bsc, b1]).reshape(1, 160).astype(jnp.float32)
    w2b = w2.astype(jnp.bfloat16)
    b2r = b2.reshape(1, 64).astype(jnp.float32)
    w3b = w3.astype(jnp.bfloat16)
    b3r = b3.reshape(1, 128).astype(jnp.float32)

    kernel = functools.partial(_detail_path_kernel, Ho=Ho, Wo=Wo)

    m_total = B * Ho * Wo
    flops = 2 * m_total * (27 * 160 + 288 * 64 + 576 * 128)
    bytes_accessed = (p_in.size * 2 + w01.size * 2 + w2b.size * 2 + w3b.size * 2
                      + b01.size * 4 + b2r.size * 4 + b3r.size * 4
                      + m_total * 128 * 4)

    out = pl.pallas_call(
        kernel,
        out_shape=jax.ShapeDtypeStruct((B, Ho, Wo, 128), jnp.float32),
        grid=(B,),
        in_specs=[
            pl.BlockSpec((1, Ho, Wo, 27), lambda b: (b, 0, 0, 0)),
            pl.BlockSpec((27, 160), lambda b: (0, 0)),
            pl.BlockSpec((1, 160), lambda b: (0, 0)),
            pl.BlockSpec((288, 64), lambda b: (0, 0)),
            pl.BlockSpec((1, 64), lambda b: (0, 0)),
            pl.BlockSpec((576, 128), lambda b: (0, 0)),
            pl.BlockSpec((1, 128), lambda b: (0, 0)),
        ],
        out_specs=pl.BlockSpec((1, Ho, Wo, 128), lambda b: (b, 0, 0, 0)),
        scratch_shapes=[
            pltpu.VMEM((Ho + 2, Wo + 2, 32), jnp.bfloat16),   # padded h1
            pltpu.VMEM((Ho + 2, Wo + 2, 64), jnp.bfloat16),   # padded h2
        ],
        compiler_params=pltpu.CompilerParams(
            dimension_semantics=("parallel",)),
        cost_estimate=pl.CostEstimate(flops=flops, transcendentals=0,
                                      bytes_accessed=bytes_accessed),
    )(p_in, w01, b01, w2b, b2r, w3b, b3r)

    return jnp.transpose(out, (0, 3, 1, 2))              # back to NCHW


# --------------------------------------------------------------------------
# Pure-JAX reference (inference-mode BN, f32, HIGHEST precision)
# --------------------------------------------------------------------------
def _reference(x, params):
    def conv(z, w, stride):
        return jax.lax.conv_general_dilated(
            z, w, window_strides=(stride, stride), padding=((1, 1), (1, 1)),
            dimension_numbers=("NCHW", "OIHW", "NCHW"),
            precision=jax.lax.Precision.HIGHEST)

    def bn(z, p):
        scale, bias = _fold_bn(*p)
        return z * scale[None, :, None, None] + bias[None, :, None, None]

    h = jax.nn.relu(bn(conv(x, params["left_conv1_w"], 2), params["left_bn1"]))
    h = jax.nn.relu(bn(conv(h, params["left_conv2_w"], 1), params["left_bn2"]))
    h = bn(conv(h, params["left_conv3_w"], 1), params["left_bn3"])
    r = bn(conv(x, params["short_conv_w"], 2), params["short_bn"])
    return jax.nn.relu(h + r)


# --------------------------------------------------------------------------
if __name__ == "__main__":
    B, H, W = 2, 16, 16
    key = jax.random.PRNGKey(0)
    keys = jax.random.split(key, 9)

    def conv_w(k, cout, cin):
        return jax.random.normal(k, (cout, cin, 3, 3), jnp.float32) * 0.05

    def bn_p(k, c):
        k1, k2, k3, k4 = jax.random.split(k, 4)
        gamma = 1.0 + 0.1 * jax.random.normal(k1, (c,), jnp.float32)
        beta = 0.1 * jax.random.normal(k2, (c,), jnp.float32)
        mean = 0.1 * jax.random.normal(k3, (c,), jnp.float32)
        var = 1.0 + 0.2 * jax.random.uniform(k4, (c,), jnp.float32)
        return gamma, beta, mean, var

    params = {
        "left_conv1_w": conv_w(keys[0], 32, 3),
        "left_bn1": bn_p(keys[1], 32),
        "left_conv2_w": conv_w(keys[2], 64, 32),
        "left_bn2": bn_p(keys[3], 64),
        "left_conv3_w": conv_w(keys[4], 128, 64),
        "left_bn3": bn_p(keys[5], 128),
        "short_conv_w": conv_w(keys[6], 128, 3),
        "short_bn": bn_p(keys[7], 128),
    }

    x = jax.random.normal(keys[8], (B, 3, H, W), jnp.float32)

    out = jax.jit(detail_path_forward)(x, params)
    out = jax.block_until_ready(out)

    ref = _reference(x, params)
    assert out.shape == (B, 128, H // 2, W // 2), out.shape
    # Tolerance accommodates bf16 MXU operands (f32 accumulation) vs. the
    # HIGHEST-precision f32 XLA reference convolutions.
    max_err = float(jnp.max(jnp.abs(out - ref)))
    assert jnp.allclose(out, ref, atol=5e-2, rtol=5e-2), f"max abs err {max_err}"

    print("KERNEL_OK")
</pallas_src>

<mosaic_0001>
module attributes {stable_mosaic.version = 11 : i64} {
  func.func @_detail_path_kernel(%arg0: i32, %arg1: memref<1x8x8x27xbf16, #tpu.memory_space<vmem>>, %arg2: memref<27x160xbf16, #tpu.memory_space<vmem>>, %arg3: memref<1x160xf32, #tpu.memory_space<vmem>>, %arg4: memref<288x64xbf16, #tpu.memory_space<vmem>>, %arg5: memref<1x64xf32, #tpu.memory_space<vmem>>, %arg6: memref<576x128xbf16, #tpu.memory_space<vmem>>, %arg7: memref<1x128xf32, #tpu.memory_space<vmem>>, %arg8: memref<1x8x8x128xf32, #tpu.memory_space<vmem>>, %arg9: memref<10x10x32xbf16, #tpu.memory_space<vmem>>, %arg10: memref<10x10x64xbf16, #tpu.memory_space<vmem>>) attributes {dimension_semantics = [#tpu.dimension_semantics<parallel>], iteration_bounds = array<i64: 2>, scalar_prefetch = 0 : i64, scratch_operands = 2 : i64, tpu.core_type = #tpu.core_type<tc>, window_params = [{transform_indices = @transform_0, window_bounds = array<i64: 1, 8, 8, 27>}, {pipeline_mode = #tpu.pipeline_mode<synchronous>, transform_indices = @transform_1, window_bounds = array<i64: 27, 160>}, {pipeline_mode = #tpu.pipeline_mode<synchronous>, transform_indices = @transform_2, window_bounds = array<i64: 1, 160>}, {pipeline_mode = #tpu.pipeline_mode<synchronous>, transform_indices = @transform_3, window_bounds = array<i64: 288, 64>}, {pipeline_mode = #tpu.pipeline_mode<synchronous>, transform_indices = @transform_4, window_bounds = array<i64: 1, 64>}, {pipeline_mode = #tpu.pipeline_mode<synchronous>, transform_indices = @transform_5, window_bounds = array<i64: 576, 128>}, {pipeline_mode = #tpu.pipeline_mode<synchronous>, transform_indices = @transform_6, window_bounds = array<i64: 1, 128>}, {transform_indices = @transform_7, window_bounds = array<i64: 1, 8, 8, 128>}]} {
    %c0 = arith.constant 0 : index
    %c0_0 = arith.constant 0 : index
    %c0_1 = arith.constant 0 : index
    %c0_2 = arith.constant 0 : index
    %0 = vector.load %arg1[%c0, %c0_0, %c0_1, %c0_2] : memref<1x8x8x27xbf16, #tpu.memory_space<vmem>>, vector<1x8x8x27xbf16>
    %1 = vector.shape_cast %0 : vector<1x8x8x27xbf16> to vector<8x8x27xbf16>
    %2 = vector.shape_cast %1 : vector<8x8x27xbf16> to vector<64x27xbf16>
    %c0_3 = arith.constant 0 : index
    %c0_4 = arith.constant 0 : index
    %3 = vector.load %arg2[%c0_3, %c0_4] : memref<27x160xbf16, #tpu.memory_space<vmem>>, vector<27x160xbf16>
    %cst = arith.constant dense<0.000000e+00> : vector<64x160xf32>
    %4 = tpu.matmul %2, %3, %cst {dimension_numbers = #tpu.dot_dimension_numbers<[1], [0], [0], [1], [0, 0, 1, 1], [], []>} : vector<64x27xbf16>, vector<27x160xbf16>, vector<64x160xf32> -> vector<64x160xf32>
    %c0_5 = arith.constant 0 : index
    %c0_6 = arith.constant 0 : index
    %5 = vector.load %arg3[%c0_5, %c0_6] : memref<1x160xf32, #tpu.memory_space<vmem>>, vector<1x160xf32>
    %6 = vector.broadcast %5 : vector<1x160xf32> to vector<64x160xf32>
    %7 = arith.addf %4, %6 : vector<64x160xf32>
    %8 = vector.extract_strided_slice %7 {offsets = [0, 0], sizes = [64, 128], strides = [1, 1]} : vector<64x160xf32> to vector<64x128xf32>
    %9 = vector.extract_strided_slice %7 {offsets = [0, 128], sizes = [64, 32], strides = [1, 1]} : vector<64x160xf32> to vector<64x32xf32>
    %cst_7 = arith.constant 0.000000e+00 : f32
    %10 = vector.broadcast %cst_7 : f32 to vector<64x32xf32>
    %11 = arith.maximumf %9, %10 : vector<64x32xf32>
    %12 = arith.truncf %11 : vector<64x32xf32> to vector<64x32xbf16>
    %cst_8 = arith.constant 0.000000e+00 : bf16
    %13 = vector.broadcast %cst_8 : bf16 to vector<10x10x32xbf16>
    %c0_9 = arith.constant 0 : index
    %c0_10 = arith.constant 0 : index
    %c0_11 = arith.constant 0 : index
    %14 = vector.load %arg9[%c0_9, %c0_10, %c0_11] : memref<10x10x32xbf16, #tpu.memory_space<vmem>>, vector<10x10x32xbf16>
    tpu.vector_store %arg9[%c0_9, %c0_10, %c0_11], %13 {strides = array<i32>} : memref<10x10x32xbf16, #tpu.memory_space<vmem>>, vector<10x10x32xbf16>,
    %15 = vector.shape_cast %12 : vector<64x32xbf16> to vector<8x8x32xbf16>
    %c1 = arith.constant 1 : index
    %c1_12 = arith.constant 1 : index
    %c0_13 = arith.constant 0 : index
    %16 = vector.load %arg9[%c1, %c1_12, %c0_13] : memref<10x10x32xbf16, #tpu.memory_space<vmem>>, vector<8x8x32xbf16>
    tpu.vector_store %arg9[%c1, %c1_12, %c0_13], %15 {strides = array<i32>} : memref<10x10x32xbf16, #tpu.memory_space<vmem>>, vector<8x8x32xbf16>,
    %c0_14 = arith.constant 0 : index
    %c0_15 = arith.constant 0 : index
    %c0_16 = arith.constant 0 : index
    %17 = vector.load %arg9[%c0_14, %c0_15, %c0_16] : memref<10x10x32xbf16, #tpu.memory_space<vmem>>, vector<8x8x32xbf16>
    %18 = vector.shape_cast %17 : vector<8x8x32xbf16> to vector<64x32xbf16>
    %c0_17 = arith.constant 0 : index
    %c1_18 = arith.constant 1 : index
    %c0_19 = arith.constant 0 : index
    %19 = vector.load %arg9[%c0_17, %c1_18, %c0_19] : memref<10x10x32xbf16, #tpu.memory_space<vmem>>, vector<8x8x32xbf16>
    %20 = vector.shape_cast %19 : vector<8x8x32xbf16> to vector<64x32xbf16>
    %c0_20 = arith.constant 0 : index
    %c2 = arith.constant 2 : index
    %c0_21 = arith.constant 0 : index
    %21 = vector.load %arg9[%c0_20, %c2, %c0_21] : memref<10x10x32xbf16, #tpu.memory_space<vmem>>, vector<8x8x32xbf16>
    %22 = vector.shape_cast %21 : vector<8x8x32xbf16> to vector<64x32xbf16>
    %c1_22 = arith.constant 1 : index
    %c0_23 = arith.constant 0 : index
    %c0_24 = arith.constant 0 : index
    %23 = vector.load %arg9[%c1_22, %c0_23, %c0_24] : memref<10x10x32xbf16, #tpu.memory_space<vmem>>, vector<8x8x32xbf16>
    %24 = vector.shape_cast %23 : vector<8x8x32xbf16> to vector<64x32xbf16>
    %c1_25 = arith.constant 1 : index
    %c1_26 = arith.constant 1 : index
    %c0_27 = arith.constant 0 : index
    %25 = vector.load %arg9[%c1_25, %c1_26, %c0_27] : memref<10x10x32xbf16, #tpu.memory_space<vmem>>, vector<8x8x32xbf16>
    %26 = vector.shape_cast %25 : vector<8x8x32xbf16> to vector<64x32xbf16>
    %c1_28 = arith.constant 1 : index
    %c2_29 = arith.constant 2 : index
    %c0_30 = arith.constant 0 : index
    %27 = vector.load %arg9[%c1_28, %c2_29, %c0_30] : memref<10x10x32xbf16, #tpu.memory_space<vmem>>, vector<8x8x32xbf16>
    %28 = vector.shape_cast %27 : vector<8x8x32xbf16> to vector<64x32xbf16>
    %c2_31 = arith.constant 2 : index
    %c0_32 = arith.constant 0 : index
    %c0_33 = arith.constant 0 : index
    %29 = vector.load %arg9[%c2_31, %c0_32, %c0_33] : memref<10x10x32xbf16, #tpu.memory_space<vmem>>, vector<8x8x32xbf16>
    %30 = vector.shape_cast %29 : vector<8x8x32xbf16> to vector<64x32xbf16>
    %c2_34 = arith.constant 2 : index
    %c1_35 = arith.constant 1 : index
    %c0_36 = arith.constant 0 : index
    %31 = vector.load %arg9[%c2_34, %c1_35, %c0_36] : memref<10x10x32xbf16, #tpu.memory_space<vmem>>, vector<8x8x32xbf16>
    %32 = vector.shape_cast %31 : vector<8x8x32xbf16> to vector<64x32xbf16>
    %c2_37 = arith.constant 2 : index
    %c2_38 = arith.constant 2 : index
    %c0_39 = arith.constant 0 : index
    %33 = vector.load %arg9[%c2_37, %c2_38, %c0_39] : memref<10x10x32xbf16, #tpu.memory_space<vmem>>, vector<8x8x32xbf16>
    %34 = vector.shape_cast %33 : vector<8x8x32xbf16> to vector<64x32xbf16>
    %35 = tpu.concatenate %18, %20, %22, %24, %26, %28, %30, %32, %34 in 1 : vector<64x32xbf16>, vector<64x32xbf16>, vector<64x32xbf16>, vector<64x32xbf16>, vector<64x32xbf16>, vector<64x32xbf16>, vector<64x32xbf16>, vector<64x32xbf16>, vector<64x32xbf16> -> vector<64x288xbf16>
    %c0_40 = arith.constant 0 : index
    %c0_41 = arith.constant 0 : index
    %36 = vector.load %arg4[%c0_40, %c0_41] : memref<288x64xbf16, #tpu.memory_space<vmem>>, vector<288x64xbf16>
    %cst_42 = arith.constant dense<0.000000e+00> : vector<64x64xf32>
    %37 = tpu.matmul %35, %36, %cst_42 {dimension_numbers = #tpu.dot_dimension_numbers<[1], [0], [0], [1], [0, 0, 1, 1], [], []>} : vector<64x288xbf16>, vector<288x64xbf16>, vector<64x64xf32> -> vector<64x64xf32>
    %c0_43 = arith.constant 0 : index
    %c0_44 = arith.constant 0 : index
    %38 = vector.load %arg5[%c0_43, %c0_44] : memref<1x64xf32, #tpu.memory_space<vmem>>, vector<1x64xf32>
    %39 = vector.broadcast %38 : vector<1x64xf32> to vector<64x64xf32>
    %40 = arith.addf %37, %39 : vector<64x64xf32>
    %cst_45 = arith.constant 0.000000e+00 : f32
    %41 = vector.broadcast %cst_45 : f32 to vector<64x64xf32>
    %42 = arith.maximumf %40, %41 : vector<64x64xf32>
    %43 = arith.truncf %42 : vector<64x64xf32> to vector<64x64xbf16>
    %cst_46 = arith.constant 0.000000e+00 : bf16
    %44 = vector.broadcast %cst_46 : bf16 to vector<10x10x64xbf16>
    %c0_47 = arith.constant 0 : index
    %c0_48 = arith.constant 0 : index
    %c0_49 = arith.constant 0 : index
    %45 = vector.load %arg10[%c0_47, %c0_48, %c0_49] : memref<10x10x64xbf16, #tpu.memory_space<vmem>>, vector<10x10x64xbf16>
    tpu.vector_store %arg10[%c0_47, %c0_48, %c0_49], %44 {strides = array<i32>} : memref<10x10x64xbf16, #tpu.memory_space<vmem>>, vector<10x10x64xbf16>,
    %46 = vector.shape_cast %43 : vector<64x64xbf16> to vector<8x8x64xbf16>
    %c1_50 = arith.constant 1 : index
    %c1_51 = arith.constant 1 : index
    %c0_52 = arith.constant 0 : index
    %47 = vector.load %arg10[%c1_50, %c1_51, %c0_52] : memref<10x10x64xbf16, #tpu.memory_space<vmem>>, vector<8x8x64xbf16>
    tpu.vector_store %arg10[%c1_50, %c1_51, %c0_52], %46 {strides = array<i32>} : memref<10x10x64xbf16, #tpu.memory_space<vmem>>, vector<8x8x64xbf16>,
    %c0_53 = arith.constant 0 : index
    %c0_54 = arith.constant 0 : index
    %c0_55 = arith.constant 0 : index
    %48 = vector.load %arg10[%c0_53, %c0_54, %c0_55] : memref<10x10x64xbf16, #tpu.memory_space<vmem>>, vector<8x8x64xbf16>
    %49 = vector.shape_cast %48 : vector<8x8x64xbf16> to vector<64x64xbf16>
    %c0_56 = arith.constant 0 : index
    %c1_57 = arith.constant 1 : index
    %c0_58 = arith.constant 0 : index
    %50 = vector.load %arg10[%c0_56, %c1_57, %c0_58] : memref<10x10x64xbf16, #tpu.memory_space<vmem>>, vector<8x8x64xbf16>
    %51 = vector.shape_cast %50 : vector<8x8x64xbf16> to vector<64x64xbf16>
    %c0_59 = arith.constant 0 : index
    %c2_60 = arith.constant 2 : index
    %c0_61 = arith.constant 0 : index
    %52 = vector.load %arg10[%c0_59, %c2_60, %c0_61] : memref<10x10x64xbf16, #tpu.memory_space<vmem>>, vector<8x8x64xbf16>
    %53 = vector.shape_cast %52 : vector<8x8x64xbf16> to vector<64x64xbf16>
    %c1_62 = arith.constant 1 : index
    %c0_63 = arith.constant 0 : index
    %c0_64 = arith.constant 0 : index
    %54 = vector.load %arg10[%c1_62, %c0_63, %c0_64] : memref<10x10x64xbf16, #tpu.memory_space<vmem>>, vector<8x8x64xbf16>
    %55 = vector.shape_cast %54 : vector<8x8x64xbf16> to vector<64x64xbf16>
    %c1_65 = arith.constant 1 : index
    %c1_66 = arith.constant 1 : index
    %c0_67 = arith.constant 0 : index
    %56 = vector.load %arg10[%c1_65, %c1_66, %c0_67] : memref<10x10x64xbf16, #tpu.memory_space<vmem>>, vector<8x8x64xbf16>
    %57 = vector.shape_cast %56 : vector<8x8x64xbf16> to vector<64x64xbf16>
    %c1_68 = arith.constant 1 : index
    %c2_69 = arith.constant 2 : index
    %c0_70 = arith.constant 0 : index
    %58 = vector.load %arg10[%c1_68, %c2_69, %c0_70] : memref<10x10x64xbf16, #tpu.memory_space<vmem>>, vector<8x8x64xbf16>
    %59 = vector.shape_cast %58 : vector<8x8x64xbf16> to vector<64x64xbf16>
    %c2_71 = arith.constant 2 : index
    %c0_72 = arith.constant 0 : index
    %c0_73 = arith.constant 0 : index
    %60 = vector.load %arg10[%c2_71, %c0_72, %c0_73] : memref<10x10x64xbf16, #tpu.memory_space<vmem>>, vector<8x8x64xbf16>
    %61 = vector.shape_cast %60 : vector<8x8x64xbf16> to vector<64x64xbf16>
    %c2_74 = arith.constant 2 : index
    %c1_75 = arith.constant 1 : index
    %c0_76 = arith.constant 0 : index
    %62 = vector.load %arg10[%c2_74, %c1_75, %c0_76] : memref<10x10x64xbf16, #tpu.memory_space<vmem>>, vector<8x8x64xbf16>
    %63 = vector.shape_cast %62 : vector<8x8x64xbf16> to vector<64x64xbf16>
    %c2_77 = arith.constant 2 : index
    %c2_78 = arith.constant 2 : index
    %c0_79 = arith.constant 0 : index
    %64 = vector.load %arg10[%c2_77, %c2_78, %c0_79] : memref<10x10x64xbf16, #tpu.memory_space<vmem>>, vector<8x8x64xbf16>
    %65 = vector.shape_cast %64 : vector<8x8x64xbf16> to vector<64x64xbf16>
    %66 = tpu.concatenate %49, %51, %53, %55, %57, %59, %61, %63, %65 in 1 : vector<64x64xbf16>, vector<64x64xbf16>, vector<64x64xbf16>, vector<64x64xbf16>, vector<64x64xbf16>, vector<64x64xbf16>, vector<64x64xbf16>, vector<64x64xbf16>, vector<64x64xbf16> -> vector<64x576xbf16>
    %c0_80 = arith.constant 0 : index
    %c0_81 = arith.constant 0 : index
    %67 = vector.load %arg6[%c0_80, %c0_81] : memref<576x128xbf16, #tpu.memory_space<vmem>>, vector<576x128xbf16>
    %cst_82 = arith.constant dense<0.000000e+00> : vector<64x128xf32>
    %68 = tpu.matmul %66, %67, %cst_82 {dimension_numbers = #tpu.dot_dimension_numbers<[1], [0], [0], [1], [0, 0, 1, 1], [], []>} : vector<64x576xbf16>, vector<576x128xbf16>, vector<64x128xf32> -> vector<64x128xf32>
    %c0_83 = arith.constant 0 : index
    %c0_84 = arith.constant 0 : index
    %69 = vector.load %arg7[%c0_83, %c0_84] : memref<1x128xf32, #tpu.memory_space<vmem>>, vector<1x128xf32>
    %70 = vector.broadcast %69 : vector<1x128xf32> to vector<64x128xf32>
    %71 = arith.addf %68, %70 : vector<64x128xf32>
    %72 = arith.addf %71, %8 : vector<64x128xf32>
    %cst_85 = arith.constant 0.000000e+00 : f32
    %73 = vector.broadcast %cst_85 : f32 to vector<64x128xf32>
    %74 = arith.maximumf %72, %73 : vector<64x128xf32>
    %75 = vector.shape_cast %74 : vector<64x128xf32> to vector<1x8x8x128xf32>
    %c0_86 = arith.constant 0 : index
    %c0_87 = arith.constant 0 : index
    %c0_88 = arith.constant 0 : index
    %c0_89 = arith.constant 0 : index
    %76 = vector.load %arg8[%c0_86, %c0_87, %c0_88, %c0_89] : memref<1x8x8x128xf32, #tpu.memory_space<vmem>>, vector<1x8x8x128xf32>
    tpu.vector_store %arg8[%c0_86, %c0_87, %c0_88, %c0_89], %75 {strides = array<i32>} : memref<1x8x8x128xf32, #tpu.memory_space<vmem>>, vector<1x8x8x128xf32>,
    return
  }
  func.func @transform_0(%arg0: i32) -> (i32, i32, i32, i32) {
    %c0_i32 = arith.constant 0 : i32
    %c0_i32_0 = arith.constant 0 : i32
    %c0_i32_1 = arith.constant 0 : i32
    %c0_i32_2 = arith.constant 0 : i32
    return %arg0, %c0_i32, %c0_i32_0, %c0_i32_1 : i32, i32, i32, i32
  }
  func.func @transform_1(%arg0: i32) -> (i32, i32) {
    %c0_i32 = arith.constant 0 : i32
    %c0_i32_0 = arith.constant 0 : i32
    %c0_i32_1 = arith.constant 0 : i32
    return %c0_i32, %c0_i32_0 : i32, i32
  }
  func.func @transform_2(%arg0: i32) -> (i32, i32) {
    %c0_i32 = arith.constant 0 : i32
    %c0_i32_0 = arith.constant 0 : i32
    %c0_i32_1 = arith.constant 0 : i32
    return %c0_i32, %c0_i32_0 : i32, i32
  }
  func.func @transform_3(%arg0: i32) -> (i32, i32) {
    %c0_i32 = arith.constant 0 : i32
    %c0_i32_0 = arith.constant 0 : i32
    %c0_i32_1 = arith.constant 0 : i32
    return %c0_i32, %c0_i32_0 : i32, i32
  }
  func.func @transform_4(%arg0: i32) -> (i32, i32) {
    %c0_i32 = arith.constant 0 : i32
    %c0_i32_0 = arith.constant 0 : i32
    %c0_i32_1 = arith.constant 0 : i32
    return %c0_i32, %c0_i32_0 : i32, i32
  }
  func.func @transform_5(%arg0: i32) -> (i32, i32) {
    %c0_i32 = arith.constant 0 : i32
    %c0_i32_0 = arith.constant 0 : i32
    %c0_i32_1 = arith.constant 0 : i32
    return %c0_i32, %c0_i32_0 : i32, i32
  }
  func.func @transform_6(%arg0: i32) -> (i32, i32) {
    %c0_i32 = arith.constant 0 : i32
    %c0_i32_0 = arith.constant 0 : i32
    %c0_i32_1 = arith.constant 0 : i32
    return %c0_i32, %c0_i32_0 : i32, i32
  }
  func.func @transform_7(%arg0: i32) -> (i32, i32, i32, i32) {
    %c0_i32 = arith.constant 0 : i32
    %c0_i32_0 = arith.constant 0 : i32
    %c0_i32_1 = arith.constant 0 : i32
    %c0_i32_2 = arith.constant 0 : i32
    return %arg0, %c0_i32, %c0_i32_0, %c0_i32_1 : i32, i32, i32, i32
  }
}

</mosaic_0001>

<llo_original>
// kernel: detail_path_forward.1
$region0: #{detail_path_forward.1}
  #allocation0 [shape = 'u32[]', space=smem, size = 0x4, offset = 0x4, fixed_abs, tag = 'smem constant byte address 0x4 - core index']
  #allocation1 [shape = 'u32[144,128]{1,0:T(1,128)}', space=vmem, size = 0x12000, scoped, tag = 'internal scratch']
  #allocation2 [shape = 'bf16[10,10,32]{2,1,0:T(8,128)(2,1)}', space=vmem, size = 0xa000, scoped, tag = 'scratch operand']
  #allocation3 [shape = 'bf16[10,10,64]{2,1,0:T(8,128)(2,1)}', space=vmem, size = 0xa000, scoped, tag = 'scratch operand']
  %s0 = inlined_call_operand.vmem [shape: bf16[2,8,8,27], index: 0, kind: input, shape index: {}]
  %s1 = inlined_call_operand.vmem [shape: bf16[27,160], index: 1, kind: input, shape index: {}]
  %s2 = inlined_call_operand.vmem [shape: f32[1,160], index: 2, kind: input, shape index: {}]
  %s3 = inlined_call_operand.vmem [shape: bf16[288,64], index: 3, kind: input, shape index: {}]
  %s4 = inlined_call_operand.vmem [shape: f32[1,64], index: 4, kind: input, shape index: {}]
  %s5 = inlined_call_operand.vmem [shape: bf16[576,128], index: 5, kind: input, shape index: {}]
  %s6 = inlined_call_operand.vmem [shape: f32[1,128], index: 6, kind: input, shape index: {}]
  %s7 = inlined_call_operand.hbm [shape: f32[2,8,8,128], index: 7, kind: output, shape index: {}]
  %s8 = sld [smem:[#allocation0]]
  $region61: #{detail_path_forward.1} parent=0
    _
  %s10 = ssub.s32 1, %s8
  %s11 = scalar_select 0, %s10, %s8
  $region1: #{detail_path_forward.1} parent=0
    #allocation4 [shape = 'u8[65536]{0}', space=vmem, size = 0x10000, scoped, tag = 'output window, operand 0']
    #allocation5 [shape = 's32[2]{0}', space=sflag, size = 0x8, scoped, tag = 'scoped memory for detail_path_forward.1']
    %12 = vsyncpa [#allocation5], 0
    %s13 = scalar_lea.sflag [#allocation5], 1
    %14 = vsyncpa %s13, 0
    loop: start=0, step=1, limit=4
    $region2: #{detail_path_forward.1} parent=1 // loop_pre_header
      _
    $region3: #{detail_path_forward.1} parent=1 // loop_header
      %s16 = sphi 0, %s20
      %p17 = scmp.ge.s32.totalorder %s16, 4
      %s26 = sphi 0, %s28
      %s29 = sphi 0, %s26
      %s30 = sphi 0, %s29
      %s46 = sphi 0, %s30
      %s50 = sphi 0, %s50
      %s52 = sphi 0, %s50
      %s53 = sphi 0, %s52
      %s67 = sphi 0, %s53
      %s71 = sphi 0, %s71
      %s73 = sphi 0, %s71
      %s74 = sphi 0, %s73
      %s88 = sphi 0, %s74
      %s92 = sphi 0, %s92
      %s94 = sphi 0, %s92
      %s95 = sphi 0, %s94
      %s109 = sphi 0, %s95
      %s113 = sphi 0, %s113
      %s115 = sphi 0, %s113
      %s116 = sphi 0, %s115
      %s130 = sphi 0, %s116
      %s134 = sphi 0, %s134
      %s136 = sphi 0, %s134
      %s137 = sphi 0, %s136
      %s151 = sphi 0, %s137
      %s155 = sphi 0, %s155
      %s157 = sphi 0, %s155
      %s158 = sphi 0, %s157
      %s172 = sphi 0, %s158
      %s178 = sphi 0, %s180
      %s181 = sphi 0, %s178
      %s182 = sphi 0, %s181
      %s198 = sphi 0, %s182
    $region4: #{detail_path_forward.1} parent=1 // loop_header_branch
      %19 = sbr.rel (%p17) target = $region8
    $region5: #{detail_path_forward.1} parent=1 // loop_body
      %s21 = ssub.s32 %s16, 1
      %s22 = ssub.s32 %s16, 2
      %s23 = sadd.s32 %s16, 1
      %s24 = ssub.s32 %s16, %s23
      %p25 = scmp.eq.s32.totalorder %s24, 0
      %s27 = sadd.s32 %s26, 1
      %s28 = scalar_select %p25, %s26, %s27
      %p31 = pneg %p25
      %p32 = scmp.eq.s32.totalorder %s16, 1
      %p33 = por %p31, %p32
      %p34 = scmp.ne.s32.totalorder %s26, %s29
      %p35 = scmp.eq.s32.totalorder %s16, 0
      %p36 = por %p34, %p35
      %p37 = scmp.ne.s32.totalorder %s26, %s29
      %p38 = scmp.eq.s32.totalorder %s21, 1
      %p39 = por %p37, %p38
      %p40 = scmp.ne.s32.totalorder %s29, %s30
      %p41 = scmp.eq.s32.totalorder %s21, 0
      %p42 = por %p40, %p41
      %p43 = scmp.ne.s32.totalorder %s29, %s30
      %p44 = scmp.eq.s32.totalorder %s22, 1
      %p45 = por %p43, %p44
      %p47 = scmp.ne.s32.totalorder %s30, %s46
      %p48 = scmp.eq.s32.totalorder %s22, 0
      %p49 = por %p47, %p48
      %s51 = sadd.s32 %s50, 1
      %p54 = scmp.eq.s32.totalorder %s16, 1
      %p55 = scmp.ne.s32.totalorder %s50, %s52
      %p56 = scmp.eq.s32.totalorder %s16, 0
      %p57 = por %p55, %p56
      %p58 = scmp.ne.s32.totalorder %s50, %s52
      %p59 = scmp.eq.s32.totalorder %s21, 1
      %p60 = por %p58, %p59
      %p61 = scmp.ne.s32.totalorder %s52, %s53
      %p62 = scmp.eq.s32.totalorder %s21, 0
      %p63 = por %p61, %p62
      %p64 = scmp.ne.s32.totalorder %s52, %s53
      %p65 = scmp.eq.s32.totalorder %s22, 1
      %p66 = por %p64, %p65
      %p68 = scmp.ne.s32.totalorder %s53, %s67
      %p69 = scmp.eq.s32.totalorder %s22, 0
      %p70 = por %p68, %p69
      %s72 = sadd.s32 %s71, 1
      %p75 = scmp.eq.s32.totalorder %s16, 1
      %p76 = scmp.ne.s32.totalorder %s71, %s73
      %p77 = scmp.eq.s32.totalorder %s16, 0
      %p78 = por %p76, %p77
      %p79 = scmp.ne.s32.totalorder %s71, %s73
      %p80 = scmp.eq.s32.totalorder %s21, 1
      %p81 = por %p79, %p80
      %p82 = scmp.ne.s32.totalorder %s73, %s74
      %p83 = scmp.eq.s32.totalorder %s21, 0
      %p84 = por %p82, %p83
      %p85 = scmp.ne.s32.totalorder %s73, %s74
      %p86 = scmp.eq.s32.totalorder %s22, 1
      %p87 = por %p85, %p86
      %p89 = scmp.ne.s32.totalorder %s74, %s88
      %p90 = scmp.eq.s32.totalorder %s22, 0
      %p91 = por %p89, %p90
      %s93 = sadd.s32 %s92, 1
      %p96 = scmp.eq.s32.totalorder %s16, 1
      %p97 = scmp.ne.s32.totalorder %s92, %s94
      %p98 = scmp.eq.s32.totalorder %s16, 0
      %p99 = por %p97, %p98
      %p100 = scmp.ne.s32.totalorder %s92, %s94
      %p101 = scmp.eq.s32.totalorder %s21, 1
      %p102 = por %p100, %p101
      %p103 = scmp.ne.s32.totalorder %s94, %s95
      %p104 = scmp.eq.s32.totalorder %s21, 0
      %p105 = por %p103, %p104
      %p106 = scmp.ne.s32.totalorder %s94, %s95
      %p107 = scmp.eq.s32.totalorder %s22, 1
      %p108 = por %p106, %p107
      %p110 = scmp.ne.s32.totalorder %s95, %s109
      %p111 = scmp.eq.s32.totalorder %s22, 0
      %p112 = por %p110, %p111
      %s114 = sadd.s32 %s113, 1
      %p117 = scmp.eq.s32.totalorder %s16, 1
      %p118 = scmp.ne.s32.totalorder %s113, %s115
      %p119 = scmp.eq.s32.totalorder %s16, 0
      %p120 = por %p118, %p119
      %p121 = scmp.ne.s32.totalorder %s113, %s115
      %p122 = scmp.eq.s32.totalorder %s21, 1
      %p123 = por %p121, %p122
      %p124 = scmp.ne.s32.totalorder %s115, %s116
      %p125 = scmp.eq.s32.totalorder %s21, 0
      %p126 = por %p124, %p125
      %p127 = scmp.ne.s32.totalorder %s115, %s116
      %p128 = scmp.eq.s32.totalorder %s22, 1
      %p129 = por %p127, %p128
      %p131 = scmp.ne.s32.totalorder %s116, %s130
      %p132 = scmp.eq.s32.totalorder %s22, 0
      %p133 = por %p131, %p132
      %s135 = sadd.s32 %s134, 1
      %p138 = scmp.eq.s32.totalorder %s16, 1
      %p139 = scmp.ne.s32.totalorder %s134, %s136
      %p140 = scmp.eq.s32.totalorder %s16, 0
      %p141 = por %p139, %p140
      %p142 = scmp.ne.s32.totalorder %s134, %s136
      %p143 = scmp.eq.s32.totalorder %s21, 1
      %p144 = por %p142, %p143
      %p145 = scmp.ne.s32.totalorder %s136, %s137
      %p146 = scmp.eq.s32.totalorder %s21, 0
      %p147 = por %p145, %p146
      %p148 = scmp.ne.s32.totalorder %s136, %s137
      %p149 = scmp.eq.s32.totalorder %s22, 1
      %p150 = por %p148, %p149
      %p152 = scmp.ne.s32.totalorder %s137, %s151
      %p153 = scmp.eq.s32.totalorder %s22, 0
      %p154 = por %p152, %p153
      %s156 = sadd.s32 %s155, 1
      %p159 = scmp.eq.s32.totalorder %s16, 1
      %p160 = scmp.ne.s32.totalorder %s155, %s157
      %p161 = scmp.eq.s32.totalorder %s16, 0
      %p162 = por %p160, %p161
      %p163 = scmp.ne.s32.totalorder %s155, %s157
      %p164 = scmp.eq.s32.totalorder %s21, 1
      %p165 = por %p163, %p164
      %p166 = scmp.ne.s32.totalorder %s157, %s158
      %p167 = scmp.eq.s32.totalorder %s21, 0
      %p168 = por %p166, %p167
      %p169 = scmp.ne.s32.totalorder %s157, %s158
      %p170 = scmp.eq.s32.totalorder %s22, 1
      %p171 = por %p169, %p170
      %p173 = scmp.ne.s32.totalorder %s158, %s172
      %p174 = scmp.eq.s32.totalorder %s22, 0
      %p175 = por %p173, %p174
      %s176 = ssub.s32 %s16, %s23
      %p177 = scmp.eq.s32.totalorder %s176, 0
      %s179 = sadd.s32 %s178, 1
      %s180 = scalar_select %p177, %s178, %s179
      %p183 = pneg %p177
      %p184 = scmp.eq.s32.totalorder %s16, 1
      %p185 = por %p183, %p184
      %p186 = scmp.ne.s32.totalorder %s178, %s181
      %p187 = scmp.eq.s32.totalorder %s16, 0
      %p188 = por %p186, %p187
      %p189 = scmp.ne.s32.totalorder %s178, %s181
      %p190 = scmp.eq.s32.totalorder %s21, 1
      %p191 = por %p189, %p190
      %p192 = scmp.ne.s32.totalorder %s181, %s182
      %p193 = scmp.eq.s32.totalorder %s21, 0
      %p194 = por %p192, %p193
      %p195 = scmp.ne.s32.totalorder %s181, %s182
      %p196 = scmp.eq.s32.totalorder %s22, 1
      %p197 = por %p195, %p196
      %p199 = scmp.ne.s32.totalorder %s182, %s198
      %p200 = scmp.eq.s32.totalorder %s22, 0
      %p201 = por %p199, %p200
      %p202 = scmp.le.s32.totalorder 1, %s16
      %p203 = scmp.lt.s32.totalorder %s16, 3
      %p204 = pnand %p202, %p203
      %p205 = pneg %p204
      // Predicated region
      $region9: #{detail_path_forward.1} parent=5 // pred_check
        _
      $region10: #{detail_path_forward.1} parent=5 // pred_check_branch
        %207 = sbr.rel (%p204) target = $region12
      $region11: #{detail_path_forward.1} parent=5 // pred_region
        %s208 = ssub.s32 %s16, 1
        // Predicated region
        $region13: #{detail_path_forward.1} parent=11 // pred_check
          %p209 = pneg %p63
        $region14: #{detail_path_forward.1} parent=11 // pred_check_branch
          %211 = sbr.rel (%p209) target = $region16
        $region15: #{detail_path_forward.1} parent=11 // pred_region
          _
        $region16: #{detail_path_forward.1} parent=11 // pred_fallthru
          _
        // Predicated region
        $region17: #{detail_path_forward.1} parent=11 // pred_check
          %p212 = pneg %p84
        $region18: #{detail_path_forward.1} parent=11 // pred_check_branch
          %214 = sbr.rel (%p212) target = $region20
        $region19: #{detail_path_forward.1} parent=11 // pred_region
          _
        $region20: #{detail_path_forward.1} parent=11 // pred_fallthru
          _
        // Predicated region
        $region21: #{detail_path_forward.1} parent=11 // pred_check
          %p215 = pneg %p105
        $region22: #{detail_path_forward.1} parent=11 // pred_check_branch
          %217 = sbr.rel (%p215) target = $region24
        $region23: #{detail_path_forward.1} parent=11 // pred_region
          _
        $region24: #{detail_path_forward.1} parent=11 // pred_fallthru
          _
        // Predicated region
        $region25: #{detail_path_forward.1} parent=11 // pred_check
          %p218 = pneg %p126
        $region26: #{detail_path_forward.1} parent=11 // pred_check_branch
          %220 = sbr.rel (%p218) target = $region28
        $region27: #{detail_path_forward.1} parent=11 // pred_region
          _
        $region28: #{detail_path_forward.1} parent=11 // pred_fallthru
          _
        // Predicated region
        $region29: #{detail_path_forward.1} parent=11 // pred_check
          %p221 = pneg %p147
        $region30: #{detail_path_forward.1} parent=11 // pred_check_branch
          %223 = sbr.rel (%p221) target = $region32
        $region31: #{detail_path_forward.1} parent=11 // pred_region
          _
        $region32: #{detail_path_forward.1} parent=11 // pred_fallthru
          _
        // Predicated region
        $region33: #{detail_path_forward.1} parent=11 // pred_check
          %p224 = pneg %p168
        $region34: #{detail_path_forward.1} parent=11 // pred_check_branch
          %226 = sbr.rel (%p224) target = $region36
        $region35: #{detail_path_forward.1} parent=11 // pred_region
          _
        $region36: #{detail_path_forward.1} parent=11 // pred_fallthru
          _
      $region12: #{detail_path_forward.1} parent=5 // pred_fallthru
        _
      %p227 = scmp.lt.s32.totalorder %s16, 2
      // Predicated region
      $region37: #{detail_path_forward.1} parent=5 // pred_check
        %p228 = pneg %p227
      $region38: #{detail_path_forward.1} parent=5 // pred_check_branch
        %230 = sbr.rel (%p228) target = $region40
      $region39: #{detail_path_forward.1} parent=5 // pred_region
        // Predicated region
        $region41: #{detail_path_forward.1} parent=39 // pred_check
          %p231 = pneg %p36
        $region42: #{detail_path_forward.1} parent=39 // pred_check_branch
          %233 = sbr.rel (%p231) target = $region44
        $region43: #{detail_path_forward.1} parent=39 // pred_region
          %p234 = scmp.lt.s32.totalorder %s16, 1
          %s235 = scalar_select %p234, %s16, 1
          %s236 = smul.addr %s235, 8
          %s237 = smul.addr %s236, 4
          %s238 = scalar_lea.vmem %s0, %s237
        $region44: #{detail_path_forward.1} parent=39 // pred_fallthru
          _
      $region40: #{detail_path_forward.1} parent=5 // pred_fallthru
        _
      %p239 = scmp.le.s32.totalorder 1, %s16
      %p240 = scmp.lt.s32.totalorder %s16, 3
      %p241 = pnand %p239, %p240
      %p242 = pneg %p241
      // Predicated region
      $region45: #{detail_path_forward.1} parent=5 // pred_check
        _
      $region46: #{detail_path_forward.1} parent=5 // pred_check_branch
        %244 = sbr.rel (%p241) target = $region48
      $region47: #{detail_path_forward.1} parent=5 // pred_region
        %s245 = ssub.s32 %s16, 1
        %p246 = scmp.lt.s32.totalorder %s21, 1
        %s247 = scalar_select %p246, %s21, 1
        %s248 = smul.addr %s247, 8
        %s249 = smul.addr %s248, 4
        %s250 = scalar_lea.vmem %s0, %s249
        %p251 = pneg %p42
        %p252 = pneg %p39
        %p253 = pneg %p63
        %p254 = pneg %p60
        %p255 = pneg %p84
        %p256 = pneg %p81
        %p257 = pneg %p105
        %p258 = pneg %p102
        %p259 = pneg %p126
        %p260 = pneg %p123
        %p261 = pneg %p147
        %p262 = pneg %p144
        %p263 = pneg %p168
        %p264 = pneg %p165
        %p265 = pneg %p194
        %p266 = pneg %p191
        %s267 = sand.u32 %s181, 1
        %s268 = scalar_lea.sflag [#allocation5], %s267
        %s269 = sand.u32 %s181, 1
        %s270 = smul.addr %s269, 64
        %s271 = scalar_lea.vmem [#allocation4], %s270
        %p272 = scmp.lt.s32.totalorder %s21, 1
        %s273 = scalar_select %p272, %s21, 1
        %s274 = smul.addr %s273, 8
        %s275 = smul.addr %s274, 4
        %s276 = scalar_lea.vmem %s0, %s275
        %v278 = vld [vmem:[%s276] sm:$0xf]
        %v279 = vld [vmem:[%s276 + $0x4] sm:$0xf]
        %v280 = vld [vmem:[%s276 + $0x8] sm:$0xf]
        %v281 = vld [vmem:[%s276 + $0xc] sm:$0xf]
        %v282 = vld [vmem:[%s276 + $0x10] sm:$0xf]
        %v283 = vld [vmem:[%s276 + $0x14] sm:$0xf]
        %v284 = vld [vmem:[%s276 + $0x18] sm:$0xf]
        %v285 = vld [vmem:[%s276 + $0x1c] sm:$0xf]
        %v286 = vld [vmem:[%s1] sm:$0xff]
        %v287 = vld [vmem:[%s1 + $0x8] sm:$0xff]
        %v288 = vld [vmem:[%s1 + $0x10] sm:$0xff]
        %v289 = vld [vmem:[%s1 + $0x18] sm:$0x33]
        %v290 = vld [vmem:[%s2] sm:$0x3]
        %v292 = vlaneseq
        %v293 = vshrl.u32 %v292, 7
        %v294 = vsub.s32 0, %v293
        %v295 = vrot.slane %v290, %v294
        %v296 = vlaneseq
        %v297 = vshrl.u32 %v296, 7
        %v298 = vsub.s32 1, %v297
        %v299 = vrot.slane %v290, %v298
        %v310 = vunpack.c.l.b16 %v278
        %v311 = vunpack.c.l.b16 %v279
        %v312 = vunpack.c.l.b16 %v280
        %v313 = vunpack.c.l.b16 %v281
        %v314 = vunpack.c.l.b16 %v282
        %v315 = vunpack.c.l.b16 %v283
        %v316 = vunpack.c.l.b16 %v284
        %v317 = vunpack.c.l.b16 %v285
        %v318 = vpack.c.b16 %v311, %v310
        %v319 = vpack.c.b16 %v313, %v312
        %v320 = vpack.c.b16 %v315, %v314
        %v321 = vpack.c.b16 %v317, %v316
        %v326 = vunpack.c.l.b16 %v286
        %v327 = vunpack.c.h.b16 %v286
        %v328 = vunpack.c.l.b16 %v287
        %v329 = vunpack.c.h.b16 %v287
        %v330 = vunpack.c.l.b16 %v288
        %v331 = vunpack.c.h.b16 %v288
        %v332 = vunpack.c.l.b16 %v289
        %v333 = vunpack.c.h.b16 %v289
        %v334 = vpack.c.b16 %v328, %v326
        %v335 = vpack.c.b16 %v329, %v327
        %v336 = vpack.c.b16 %v332, %v330
        %v337 = vpack.c.b16 %v333, %v331
        %vm340 = vcmask 220160
        %v342 = vsel %vm340, %v318, 0
        %v345 = vsel %vm340, %v319, 0
        %v348 = vsel %vm340, %v320, 0
        %v351 = vsel %vm340, %v321, 0
        %vm353 = vcmask 1044480
        %vm354 = vcmask 1045504
        %v355 = vsel %vm353, 4294967295, 65535
        %v356 = vsel %vm354, %v355, 0
        %v358 = vand.u32 %v336, %v356
        %v361 = vand.u32 %v337, %v356
        %363 = vmatprep.subr.bf16.mxu0 0
        %364 = vmatpush1.bf16.msra.mxu0 0
        %365 = vmatprep.subr.bf16.mxu0 0
        %366 = vmatpush1.bf16.msra.mxu0 0
        %367 = vmatprep.subr.bf16.mxu0 0
        %368 = vmatpush1.bf16.msra.mxu0 0
        %369 = vmatprep.subr.bf16.mxu0 0
        %370 = vmatpush1.bf16.msra.mxu0 0
        %371 = vmatprep.subr.bf16.mxu0 0
        %372 = vmatpush1.bf16.msra.mxu0 0
        %373 = vmatprep.subr.bf16.mxu0 0
        %374 = vmatpush1.bf16.msra.mxu0 0
        %375 = vmatprep.subr.bf16.mxu0 %v361
        %376 = vmatpush1.bf16.msra.mxu0 %v358
        %377 = vmatprep.subr.bf16.mxu0 %v335
        %378 = vmatpush1.bf16.msra.mxu0 %v334
        %379 = vmatprep.subr.bf16.mxu0 0
        %380 = vmatpush2.bf16.msra.mxu0 0
        %381 = vmatprep.subr.bf16.mxu0 0
        %382 = vmatpush2.bf16.msra.mxu0 0
        %383 = vmatprep.subr.bf16.mxu0 0
        %384 = vmatpush2.bf16.msra.mxu0 0
        %385 = vmatprep.subr.bf16.mxu0 0
        %386 = vmatpush2.bf16.msra.mxu0 0
        %387 = vmatprep.subr.bf16.mxu0 0
        %388 = vmatpush2.bf16.msra.mxu0 0
        %389 = vmatprep.subr.bf16.mxu0 0
        %390 = vmatpush2.bf16.msra.mxu0 0
        %391 = vmatprep.subr.bf16.mxu0 0
        %392 = vmatpush2.bf16.msra.mxu0 0
        %393 = vmatprep.subr.bf16.mxu0 0
        %394 = vmatpush2.bf16.msra.mxu0 0
        %395 = vmatprep.mubr.bf16.mxu0 0
        %396 = vmatmul.mubr.bf16.gmra.mxu0 %v342
        %v397 = vpop.f32.mrf.mxu0
        %v398 = vadd.f32 %v295, %v397
        %v399 = vpop.f32.mrf.mxu0
        %v400 = vadd.f32 %v299, %v399
        %v401 = vpop.f32.mrf.mxu0
        %v402 = vadd.f32 %v295, %v401
        %v403 = vpop.f32.mrf.mxu0
        %v404 = vadd.f32 %v299, %v403
        %405 = vmatprep.mubr.bf16.mxu0 0
        %406 = vmatmul.mubr.bf16.gmra.mxu0 %v345
        %v407 = vpop.f32.mrf.mxu0
        %v408 = vadd.f32 %v295, %v407
        %v409 = vpop.f32.mrf.mxu0
        %v410 = vadd.f32 %v299, %v409
        %v411 = vpop.f32.mrf.mxu0
        %v412 = vadd.f32 %v295, %v411
        %v413 = vpop.f32.mrf.mxu0
        %v414 = vadd.f32 %v299, %v413
        %415 = vmatprep.mubr.bf16.mxu0 0
        %416 = vmatmul.mubr.bf16.gmra.mxu0 %v348
        %v417 = vpop.f32.mrf.mxu0
        %v418 = vadd.f32 %v295, %v417
        %v419 = vpop.f32.mrf.mxu0
        %v420 = vadd.f32 %v299, %v419
        %v421 = vpop.f32.mrf.mxu0
        %v422 = vadd.f32 %v295, %v421
        %v423 = vpop.f32.mrf.mxu0
        %v424 = vadd.f32 %v299, %v423
        %425 = vmatprep.mubr.bf16.mxu0 0
        %426 = vmatmul.mubr.bf16.gmra.mxu0 %v351
        %v427 = vpop.f32.mrf.mxu0
        %v428 = vadd.f32 %v295, %v427
        %v429 = vpop.f32.mrf.mxu0
        %v430 = vadd.f32 %v299, %v429
        %v431 = vpop.f32.mrf.mxu0
        %v432 = vadd.f32 %v295, %v431
        %v433 = vpop.f32.mrf.mxu0
        %v434 = vadd.f32 %v299, %v433
        %435 = vdwg.mxu0
        %v436 = vmax.f32 %v400, 0.0
        %v437 = vmax.f32 %v404, 0.0
        %v438 = vmax.f32 %v410, 0.0
        %v439 = vmax.f32 %v414, 0.0
        %v440 = vmax.f32 %v420, 0.0
        %v441 = vmax.f32 %v424, 0.0
        %v442 = vmax.f32 %v430, 0.0
        %v443 = vmax.f32 %v434, 0.0
        %v444 = vpack.c.bf16 %v437, %v436
        %v445 = vpack.c.bf16 %v439, %v438
        %v446 = vpack.c.bf16 %v441, %v440
        %v447 = vpack.c.bf16 %v443, %v442
        %vm448 = vcmask 257024
        %449 = vst.msk [vmem:[#allocation2] sm:$0xf] %vm448, 0
        %vm450 = vcmask 253952
        %451 = vst.msk [vmem:[#allocation2 + $0x4] sm:$0x1] %vm450, 0
        %452 = vst.msk [vmem:[#allocation2 + $0x8] sm:$0xf] %vm448, 0
        %453 = vst.msk [vmem:[#allocation2 + $0xc] sm:$0x1] %vm450, 0
        %454 = vst.msk [vmem:[#allocation2 + $0x10] sm:$0xf] %vm448, 0
        %455 = vst.msk [vmem:[#allocation2 + $0x14] sm:$0x1] %vm450, 0
        %456 = vst.msk [vmem:[#allocation2 + $0x18] sm:$0xf] %vm448, 0
        %457 = vst.msk [vmem:[#allocation2 + $0x1c] sm:$0x1] %vm450, 0
        %458 = vst.msk [vmem:[#allocation2 + $0x20] sm:$0xf] %vm448, 0
        %459 = vst.msk [vmem:[#allocation2 + $0x24] sm:$0x1] %vm450, 0
        %460 = vst.msk [vmem:[#allocation2 + $0x28] sm:$0xf] %vm448, 0
        %461 = vst.msk [vmem:[#allocation2 + $0x2c] sm:$0x1] %vm450, 0
        %462 = vst.msk [vmem:[#allocation2 + $0x30] sm:$0xf] %vm448, 0
        %463 = vst.msk [vmem:[#allocation2 + $0x34] sm:$0x1] %vm450, 0
        %464 = vst.msk [vmem:[#allocation2 + $0x38] sm:$0xf] %vm448, 0
        %465 = vst.msk [vmem:[#allocation2 + $0x3c] sm:$0x1] %vm450, 0
        %466 = vst.msk [vmem:[#allocation2 + $0x40] sm:$0xf] %vm448, 0
        %467 = vst.msk [vmem:[#allocation2 + $0x44] sm:$0x1] %vm450, 0
        %468 = vst.msk [vmem:[#allocation2 + $0x48] sm:$0xf] %vm448, 0
        %469 = vst.msk [vmem:[#allocation2 + $0x4c] sm:$0x1] %vm450, 0
        %v474 = vunpack.c.l.b16 %v444
        %v475 = vunpack.c.h.b16 %v444
        %v476 = vunpack.c.l.b16 %v445
        %v477 = vunpack.c.h.b16 %v445
        %v478 = vunpack.c.l.b16 %v446
        %v479 = vunpack.c.h.b16 %v446
        %v480 = vunpack.c.l.b16 %v447
        %v481 = vunpack.c.h.b16 %v447
        %v482 = vpack.c.b16 %v474, %v474
        %v483 = vpack.c.b16 %v475, %v475
        %v484 = vpack.c.b16 %v476, %v476
        %v485 = vpack.c.b16 %v477, %v477
        %v486 = vpack.c.b16 %v478, %v478
        %v487 = vpack.c.b16 %v479, %v479
        %v488 = vpack.c.b16 %v480, %v480
        %v489 = vpack.c.b16 %v481, %v481
        %v491 = vshrl.u32 %v482, 16
        %v493 = vrot.slane %v491, 7
        %v494 = vshll.u32 %v482, 16
        %v496 = vor.u32 %v493, %v494
        %v497 = vrot.slane %v493, 4
        %v499 = vshrl.u32 %v483, 16
        %v501 = vrot.slane %v499, 7
        %v502 = vshll.u32 %v483, 16
        %v504 = vor.u32 %v501, %v502
        %v505 = vrot.slane %v501, 4
        %v507 = vshrl.u32 %v484, 16
        %v509 = vrot.slane %v507, 7
        %v510 = vshll.u32 %v484, 16
        %v512 = vor.u32 %v509, %v510
        %v513 = vrot.slane %v509, 4
        %v515 = vshrl.u32 %v485, 16
        %v517 = vrot.slane %v515, 7
        %v518 = vshll.u32 %v485, 16
        %v520 = vor.u32 %v517, %v518
        %v521 = vrot.slane %v517, 4
        %v523 = vshrl.u32 %v486, 16
        %v525 = vrot.slane %v523, 7
        %v526 = vshll.u32 %v486, 16
        %v528 = vor.u32 %v525, %v526
        %v529 = vrot.slane %v525, 4
        %v531 = vshrl.u32 %v487, 16
        %v533 = vrot.slane %v531, 7
        %v534 = vshll.u32 %v487, 16
        %v536 = vor.u32 %v533, %v534
        %v537 = vrot.slane %v533, 4
        %v539 = vshrl.u32 %v488, 16
        %v541 = vrot.slane %v539, 7
        %v542 = vshll.u32 %v488, 16
        %v544 = vor.u32 %v541, %v542
        %v545 = vrot.slane %v541, 4
        %v547 = vshrl.u32 %v489, 16
        %v549 = vrot.slane %v547, 7
        %v550 = vshll.u32 %v489, 16
        %v552 = vor.u32 %v549, %v550
        %v553 = vrot.slane %v549, 4
        %s570 = scalar_lea.vmem [#allocation2], 8
        %vm571 = vcmask 257024
        %vm572 = vsmask.f32 7938
        %vm573 = vmand %vm571, %vm572
        %v574 = vld [vmem:[%s570] sm:$0xf]
        %v575 = vsel %vm573, %v496, %v574
        %576 = vst [vmem:[%s570] sm:$0xf] %v575
        %vm577 = vcmask 253952
        %vm578 = vsmask.f32 256
        %vm579 = vmand %vm577, %vm578
        %v580 = vld [vmem:[%s570 + $0x4] sm:$0x1]
        %v581 = vsel %vm579, %v497, %v580
        %582 = vst [vmem:[%s570 + $0x4] sm:$0x1] %v581
        %v583 = vld [vmem:[%s570 + $0x8] sm:$0xf]
        %v584 = vsel %vm573, %v504, %v583
        %585 = vst [vmem:[%s570 + $0x8] sm:$0xf] %v584
        %v586 = vld [vmem:[%s570 + $0xc] sm:$0x1]
        %v587 = vsel %vm579, %v505, %v586
        %588 = vst [vmem:[%s570 + $0xc] sm:$0x1] %v587
        %v589 = vld [vmem:[%s570 + $0x10] sm:$0xf]
        %v590 = vsel %vm573, %v512, %v589
        %591 = vst [vmem:[%s570 + $0x10] sm:$0xf] %v590
        %v592 = vld [vmem:[%s570 + $0x14] sm:$0x1]
        %v593 = vsel %vm579, %v513, %v592
        %594 = vst [vmem:[%s570 + $0x14] sm:$0x1] %v593
        %v595 = vld [vmem:[%s570 + $0x18] sm:$0xf]
        %v596 = vsel %vm573, %v520, %v595
        %597 = vst [vmem:[%s570 + $0x18] sm:$0xf] %v596
        %v598 = vld [vmem:[%s570 + $0x1c] sm:$0x1]
        %v599 = vsel %vm579, %v521, %v598
        %600 = vst [vmem:[%s570 + $0x1c] sm:$0x1] %v599
        %v601 = vld [vmem:[%s570 + $0x20] sm:$0xf]
        %v602 = vsel %vm573, %v528, %v601
        %603 = vst [vmem:[%s570 + $0x20] sm:$0xf] %v602
        %v604 = vld [vmem:[%s570 + $0x24] sm:$0x1]
        %v605 = vsel %vm579, %v529, %v604
        %606 = vst [vmem:[%s570 + $0x24] sm:$0x1] %v605
        %v607 = vld [vmem:[%s570 + $0x28] sm:$0xf]
        %v608 = vsel %vm573, %v536, %v607
        %609 = vst [vmem:[%s570 + $0x28] sm:$0xf] %v608
        %v610 = vld [vmem:[%s570 + $0x2c] sm:$0x1]
        %v611 = vsel %vm579, %v537, %v610
        %612 = vst [vmem:[%s570 + $0x2c] sm:$0x1] %v611
        %v613 = vld [vmem:[%s570 + $0x30] sm:$0xf]
        %v614 = vsel %vm573, %v544, %v613
        %615 = vst [vmem:[%s570 + $0x30] sm:$0xf] %v614
        %v616 = vld [vmem:[%s570 + $0x34] sm:$0x1]
        %v617 = vsel %vm579, %v545, %v616
        %618 = vst [vmem:[%s570 + $0x34] sm:$0x1] %v617
        %v619 = vld [vmem:[%s570 + $0x38] sm:$0xf]
        %v620 = vsel %vm573, %v552, %v619
        %621 = vst [vmem:[%s570 + $0x38] sm:$0xf] %v620
        %v622 = vld [vmem:[%s570 + $0x3c] sm:$0x1]
        %v623 = vsel %vm579, %v553, %v622
        %624 = vst [vmem:[%s570 + $0x3c] sm:$0x1] %v623
        %v625 = vld [vmem:[#allocation2] sm:$0xf]
        %v626 = vld [vmem:[#allocation2 + $0x8] sm:$0xf]
        %v627 = vld [vmem:[#allocation2 + $0x10] sm:$0xf]
        %v628 = vld [vmem:[#allocation2 + $0x18] sm:$0xf]
        %v629 = vld [vmem:[#allocation2 + $0x20] sm:$0xf]
        %v630 = vld [vmem:[#allocation2 + $0x28] sm:$0xf]
        %v631 = vld [vmem:[#allocation2 + $0x30] sm:$0xf]
        %v632 = vld [vmem:[#allocation2 + $0x38] sm:$0xf]
        %v633 = vld [vmem:[#allocation2 + $0x4] sm:$0x1]
        %v634 = vld [vmem:[#allocation2 + $0xc] sm:$0x1]
        %v635 = vld [vmem:[#allocation2 + $0x14] sm:$0x1]
        %v636 = vld [vmem:[#allocation2 + $0x1c] sm:$0x1]
        %v637 = vld [vmem:[#allocation2 + $0x24] sm:$0x1]
        %v638 = vld [vmem:[#allocation2 + $0x2c] sm:$0x1]
        %v639 = vld [vmem:[#allocation2 + $0x34] sm:$0x1]
        %v640 = vld [vmem:[#allocation2 + $0x3c] sm:$0x1]
        %vm641 = vsmask.f32 3328
        %vm642 = vsmask.f32 7440
        %vm643 = vmor %vm641, %vm642
        %v645 = vshrl.u32 %v625, 16
        %v647 = vrot.slane %v645, 4
        %v648 = vshll.u32 %v625, 16
        %v650 = vrot.slane %v648, 5
        %v651 = vor.u32 %v647, %v650
        %v652 = vrot.slane %v651, 4
        %v654 = vshll.u32 %v633, 16
        %v656 = vrot.slane %v654, 5
        %v657 = vsel %vm643, %v652, %v656
        %v659 = vshrl.u32 %v626, 16
        %v661 = vrot.slane %v659, 4
        %v662 = vshll.u32 %v626, 16
        %v664 = vrot.slane %v662, 5
        %v665 = vor.u32 %v661, %v664
        %v666 = vrot.slane %v665, 4
        %v668 = vshll.u32 %v634, 16
        %v670 = vrot.slane %v668, 5
        %v671 = vsel %vm643, %v666, %v670
        %v673 = vshrl.u32 %v627, 16
        %v675 = vrot.slane %v673, 4
        %v676 = vshll.u32 %v627, 16
        %v678 = vrot.slane %v676, 5
        %v679 = vor.u32 %v675, %v678
        %v680 = vrot.slane %v679, 4
        %v682 = vshll.u32 %v635, 16
        %v684 = vrot.slane %v682, 5
        %v685 = vsel %vm643, %v680, %v684
        %v687 = vshrl.u32 %v628, 16
        %v689 = vrot.slane %v687, 4
        %v690 = vshll.u32 %v628, 16
        %v692 = vrot.slane %v690, 5
        %v693 = vor.u32 %v689, %v692
        %v694 = vrot.slane %v693, 4
        %v696 = vshll.u32 %v636, 16
        %v698 = vrot.slane %v696, 5
        %v699 = vsel %vm643, %v694, %v698
        %v701 = vshrl.u32 %v629, 16
        %v703 = vrot.slane %v701, 4
        %v704 = vshll.u32 %v629, 16
        %v706 = vrot.slane %v704, 5
        %v707 = vor.u32 %v703, %v706
        %v708 = vrot.slane %v707, 4
        %v710 = vshll.u32 %v637, 16
        %v712 = vrot.slane %v710, 5
        %v713 = vsel %vm643, %v708, %v712
        %v715 = vshrl.u32 %v630, 16
        %v717 = vrot.slane %v715, 4
        %v718 = vshll.u32 %v630, 16
        %v720 = vrot.slane %v718, 5
        %v721 = vor.u32 %v717, %v720
        %v722 = vrot.slane %v721, 4
        %v724 = vshll.u32 %v638, 16
        %v726 = vrot.slane %v724, 5
        %v727 = vsel %vm643, %v722, %v726
        %v729 = vshrl.u32 %v631, 16
        %v731 = vrot.slane %v729, 4
        %v732 = vshll.u32 %v631, 16
        %v734 = vrot.slane %v732, 5
        %v735 = vor.u32 %v731, %v734
        %v736 = vrot.slane %v735, 4
        %v738 = vshll.u32 %v639, 16
        %v740 = vrot.slane %v738, 5
        %v741 = vsel %vm643, %v736, %v740
        %v743 = vshrl.u32 %v632, 16
        %v745 = vrot.slane %v743, 4
        %v746 = vshll.u32 %v632, 16
        %v748 = vrot.slane %v746, 5
        %v749 = vor.u32 %v745, %v748
        %v750 = vrot.slane %v749, 4
        %v752 = vshll.u32 %v640, 16
        %v754 = vrot.slane %v752, 5
        %v755 = vsel %vm643, %v750, %v754
        %v756 = vld [vmem:[#allocation2] sm:$0xe]
        %v757 = vld [vmem:[#allocation2 + $0x8] sm:$0xe]
        %v758 = vld [vmem:[#allocation2 + $0x10] sm:$0xe]
        %v759 = vld [vmem:[#allocation2 + $0x18] sm:$0xe]
        %v760 = vld [vmem:[#allocation2 + $0x20] sm:$0xe]
        %v761 = vld [vmem:[#allocation2 + $0x28] sm:$0xe]
        %v762 = vld [vmem:[#allocation2 + $0x30] sm:$0xe]
        %v763 = vld [vmem:[#allocation2 + $0x38] sm:$0xe]
        %vm780 = vcmask 1042432
        %vm781 = vcmask 1046532
        %vm782 = vmor %vm780, %vm781
        %v783 = vrot.slane %v756, 5
        %v784 = vrot.slane %v783, 4
        %v785 = vrot.slane %v633, 5
        %v786 = vsel %vm782, %v784, %v785
        %v787 = vrot.slane %v757, 5
        %v788 = vrot.slane %v787, 4
        %v789 = vrot.slane %v634, 5
        %v790 = vsel %vm782, %v788, %v789
        %v791 = vrot.slane %v758, 5
        %v792 = vrot.slane %v791, 4
        %v793 = vrot.slane %v635, 5
        %v794 = vsel %vm782, %v792, %v793
        %v795 = vrot.slane %v759, 5
        %v796 = vrot.slane %v795, 4
        %v797 = vrot.slane %v636, 5
        %v798 = vsel %vm782, %v796, %v797
        %v799 = vrot.slane %v760, 5
        %v800 = vrot.slane %v799, 4
        %v801 = vrot.slane %v637, 5
        %v802 = vsel %vm782, %v800, %v801
        %v803 = vrot.slane %v761, 5
        %v804 = vrot.slane %v803, 4
        %v805 = vrot.slane %v638, 5
        %v806 = vsel %vm782, %v804, %v805
        %v807 = vrot.slane %v762, 5
        %v808 = vrot.slane %v807, 4
        %v809 = vrot.slane %v639, 5
        %v810 = vsel %vm782, %v808, %v809
        %v811 = vrot.slane %v763, 5
        %v812 = vrot.slane %v811, 4
        %v813 = vrot.slane %v640, 5
        %v814 = vsel %vm782, %v812, %v813
        %v815 = vld [vmem:[%s570] sm:$0xf]
        %v816 = vld [vmem:[%s570 + $0x8] sm:$0xf]
        %v817 = vld [vmem:[%s570 + $0x10] sm:$0xf]
        %v818 = vld [vmem:[%s570 + $0x18] sm:$0xf]
        %v819 = vld [vmem:[%s570 + $0x20] sm:$0xf]
        %v820 = vld [vmem:[%s570 + $0x28] sm:$0xf]
        %v821 = vld [vmem:[%s570 + $0x30] sm:$0xf]
        %v822 = vld [vmem:[%s570 + $0x38] sm:$0xf]
        %v823 = vld [vmem:[%s570 + $0x4] sm:$0x1]
        %v824 = vld [vmem:[%s570 + $0xc] sm:$0x1]
        %v825 = vld [vmem:[%s570 + $0x14] sm:$0x1]
        %v826 = vld [vmem:[%s570 + $0x1c] sm:$0x1]
        %v827 = vld [vmem:[%s570 + $0x24] sm:$0x1]
        %v828 = vld [vmem:[%s570 + $0x2c] sm:$0x1]
        %v829 = vld [vmem:[%s570 + $0x34] sm:$0x1]
        %v830 = vld [vmem:[%s570 + $0x3c] sm:$0x1]
        %v832 = vshrl.u32 %v815, 16
        %v834 = vrot.slane %v832, 4
        %v835 = vshll.u32 %v815, 16
        %v837 = vrot.slane %v835, 5
        %v838 = vor.u32 %v834, %v837
        %v839 = vrot.slane %v838, 4
        %v841 = vshll.u32 %v823, 16
        %v843 = vrot.slane %v841, 5
        %v844 = vsel %vm643, %v839, %v843
        %v846 = vshrl.u32 %v816, 16
        %v848 = vrot.slane %v846, 4
        %v849 = vshll.u32 %v816, 16
        %v851 = vrot.slane %v849, 5
        %v852 = vor.u32 %v848, %v851
        %v853 = vrot.slane %v852, 4
        %v855 = vshll.u32 %v824, 16
        %v857 = vrot.slane %v855, 5
        %v858 = vsel %vm643, %v853, %v857
        %v860 = vshrl.u32 %v817, 16
        %v862 = vrot.slane %v860, 4
        %v863 = vshll.u32 %v817, 16
        %v865 = vrot.slane %v863, 5
        %v866 = vor.u32 %v862, %v865
        %v867 = vrot.slane %v866, 4
        %v869 = vshll.u32 %v825, 16
        %v871 = vrot.slane %v869, 5
        %v872 = vsel %vm643, %v867, %v871
        %v874 = vshrl.u32 %v818, 16
        %v876 = vrot.slane %v874, 4
        %v877 = vshll.u32 %v818, 16
        %v879 = vrot.slane %v877, 5
        %v880 = vor.u32 %v876, %v879
        %v881 = vrot.slane %v880, 4
        %v883 = vshll.u32 %v826, 16
        %v885 = vrot.slane %v883, 5
        %v886 = vsel %vm643, %v881, %v885
        %v888 = vshrl.u32 %v819, 16
        %v890 = vrot.slane %v888, 4
        %v891 = vshll.u32 %v819, 16
        %v893 = vrot.slane %v891, 5
        %v894 = vor.u32 %v890, %v893
        %v895 = vrot.slane %v894, 4
        %v897 = vshll.u32 %v827, 16
        %v899 = vrot.slane %v897, 5
        %v900 = vsel %vm643, %v895, %v899
        %v902 = vshrl.u32 %v820, 16
        %v904 = vrot.slane %v902, 4
        %v905 = vshll.u32 %v820, 16
        %v907 = vrot.slane %v905, 5
        %v908 = vor.u32 %v904, %v907
        %v909 = vrot.slane %v908, 4
        %v911 = vshll.u32 %v828, 16
        %v913 = vrot.slane %v911, 5
        %v914 = vsel %vm643, %v909, %v913
        %v916 = vshrl.u32 %v821, 16
        %v918 = vrot.slane %v916, 4
        %v919 = vshll.u32 %v821, 16
        %v921 = vrot.slane %v919, 5
        %v922 = vor.u32 %v918, %v921
        %v923 = vrot.slane %v922, 4
        %v925 = vshll.u32 %v829, 16
        %v927 = vrot.slane %v925, 5
        %v928 = vsel %vm643, %v923, %v927
        %v930 = vshrl.u32 %v822, 16
        %v932 = vrot.slane %v930, 4
        %v933 = vshll.u32 %v822, 16
        %v935 = vrot.slane %v933, 5
        %v936 = vor.u32 %v932, %v935
        %v937 = vrot.slane %v936, 4
        %v939 = vshll.u32 %v830, 16
        %v941 = vrot.slane %v939, 5
        %v942 = vsel %vm643, %v937, %v941
        %v943 = vld [vmem:[%s570] sm:$0xe]
        %v944 = vld [vmem:[%s570 + $0x8] sm:$0xe]
        %v945 = vld [vmem:[%s570 + $0x10] sm:$0xe]
        %v946 = vld [vmem:[%s570 + $0x18] sm:$0xe]
        %v947 = vld [vmem:[%s570 + $0x20] sm:$0xe]
        %v948 = vld [vmem:[%s570 + $0x28] sm:$0xe]
        %v949 = vld [vmem:[%s570 + $0x30] sm:$0xe]
        %v950 = vld [vmem:[%s570 + $0x38] sm:$0xe]
        %v967 = vrot.slane %v943, 5
        %v968 = vrot.slane %v967, 4
        %v969 = vrot.slane %v823, 5
        %v970 = vsel %vm782, %v968, %v969
        %v971 = vrot.slane %v944, 5
        %v972 = vrot.slane %v971, 4
        %v973 = vrot.slane %v824, 5
        %v974 = vsel %vm782, %v972, %v973
        %v975 = vrot.slane %v945, 5
        %v976 = vrot.slane %v975, 4
        %v977 = vrot.slane %v825, 5
        %v978 = vsel %vm782, %v976, %v977
        %v979 = vrot.slane %v946, 5
        %v980 = vrot.slane %v979, 4
        %v981 = vrot.slane %v826, 5
        %v982 = vsel %vm782, %v980, %v981
        %v983 = vrot.slane %v947, 5
        %v984 = vrot.slane %v983, 4
        %v985 = vrot.slane %v827, 5
        %v986 = vsel %vm782, %v984, %v985
        %v987 = vrot.slane %v948, 5
        %v988 = vrot.slane %v987, 4
        %v989 = vrot.slane %v828, 5
        %v990 = vsel %vm782, %v988, %v989
        %v991 = vrot.slane %v949, 5
        %v992 = vrot.slane %v991, 4
        %v993 = vrot.slane %v829, 5
        %v994 = vsel %vm782, %v992, %v993
        %v995 = vrot.slane %v950, 5
        %v996 = vrot.slane %v995, 4
        %v997 = vrot.slane %v830, 5
        %v998 = vsel %vm782, %v996, %v997
        %s999 = scalar_lea.vmem [#allocation2], 16
        %v1000 = vld [vmem:[%s999] sm:$0xf]
        %v1001 = vld [vmem:[%s999 + $0x8] sm:$0xf]
        %v1002 = vld [vmem:[%s999 + $0x10] sm:$0xf]
        %v1003 = vld [vmem:[%s999 + $0x18] sm:$0xf]
        %v1004 = vld [vmem:[%s999 + $0x20] sm:$0xf]
        %v1005 = vld [vmem:[%s999 + $0x28] sm:$0xf]
        %v1006 = vld [vmem:[%s999 + $0x30] sm:$0xf]
        %v1007 = vld [vmem:[%s999 + $0x38] sm:$0xf]
        %v1008 = vld [vmem:[%s999 + $0x4] sm:$0x1]
        %v1009 = vld [vmem:[%s999 + $0xc] sm:$0x1]
        %v1010 = vld [vmem:[%s999 + $0x14] sm:$0x1]
        %v1011 = vld [vmem:[%s999 + $0x1c] sm:$0x1]
        %v1012 = vld [vmem:[%s999 + $0x24] sm:$0x1]
        %v1013 = vld [vmem:[%s999 + $0x2c] sm:$0x1]
        %v1014 = vld [vmem:[%s999 + $0x34] sm:$0x1]
        %v1015 = vld [vmem:[%s999 + $0x3c] sm:$0x1]
        %v1017 = vshrl.u32 %v1000, 16
        %v1019 = vrot.slane %v1017, 4
        %v1020 = vshll.u32 %v1000, 16
        %v1022 = vrot.slane %v1020, 5
        %v1023 = vor.u32 %v1019, %v1022
        %v1024 = vrot.slane %v1023, 4
        %v1026 = vshll.u32 %v1008, 16
        %v1028 = vrot.slane %v1026, 5
        %v1029 = vsel %vm643, %v1024, %v1028
        %v1031 = vshrl.u32 %v1001, 16
        %v1033 = vrot.slane %v1031, 4
        %v1034 = vshll.u32 %v1001, 16
        %v1036 = vrot.slane %v1034, 5
        %v1037 = vor.u32 %v1033, %v1036
        %v1038 = vrot.slane %v1037, 4
        %v1040 = vshll.u32 %v1009, 16
        %v1042 = vrot.slane %v1040, 5
        %v1043 = vsel %vm643, %v1038, %v1042
        %v1045 = vshrl.u32 %v1002, 16
        %v1047 = vrot.slane %v1045, 4
        %v1048 = vshll.u32 %v1002, 16
        %v1050 = vrot.slane %v1048, 5
        %v1051 = vor.u32 %v1047, %v1050
        %v1052 = vrot.slane %v1051, 4
        %v1054 = vshll.u32 %v1010, 16
        %v1056 = vrot.slane %v1054, 5
        %v1057 = vsel %vm643, %v1052, %v1056
        %v1059 = vshrl.u32 %v1003, 16
        %v1061 = vrot.slane %v1059, 4
        %v1062 = vshll.u32 %v1003, 16
        %v1064 = vrot.slane %v1062, 5
        %v1065 = vor.u32 %v1061, %v1064
        %v1066 = vrot.slane %v1065, 4
        %v1068 = vshll.u32 %v1011, 16
        %v1070 = vrot.slane %v1068, 5
        %v1071 = vsel %vm643, %v1066, %v1070
        %v1073 = vshrl.u32 %v1004, 16
        %v1075 = vrot.slane %v1073, 4
        %v1076 = vshll.u32 %v1004, 16
        %v1078 = vrot.slane %v1076, 5
        %v1079 = vor.u32 %v1075, %v1078
        %v1080 = vrot.slane %v1079, 4
        %v1082 = vshll.u32 %v1012, 16
        %v1084 = vrot.slane %v1082, 5
        %v1085 = vsel %vm643, %v1080, %v1084
        %v1087 = vshrl.u32 %v1005, 16
        %v1089 = vrot.slane %v1087, 4
        %v1090 = vshll.u32 %v1005, 16
        %v1092 = vrot.slane %v1090, 5
        %v1093 = vor.u32 %v1089, %v1092
        %v1094 = vrot.slane %v1093, 4
        %v1096 = vshll.u32 %v1013, 16
        %v1098 = vrot.slane %v1096, 5
        %v1099 = vsel %vm643, %v1094, %v1098
        %v1101 = vshrl.u32 %v1006, 16
        %v1103 = vrot.slane %v1101, 4
        %v1104 = vshll.u32 %v1006, 16
        %v1106 = vrot.slane %v1104, 5
        %v1107 = vor.u32 %v1103, %v1106
        %v1108 = vrot.slane %v1107, 4
        %v1110 = vshll.u32 %v1014, 16
        %v1112 = vrot.slane %v1110, 5
        %v1113 = vsel %vm643, %v1108, %v1112
        %v1115 = vshrl.u32 %v1007, 16
        %v1117 = vrot.slane %v1115, 4
        %v1118 = vshll.u32 %v1007, 16
        %v1120 = vrot.slane %v1118, 5
        %v1121 = vor.u32 %v1117, %v1120
        %v1122 = vrot.slane %v1121, 4
        %v1124 = vshll.u32 %v1015, 16
        %v1126 = vrot.slane %v1124, 5
        %v1127 = vsel %vm643, %v1122, %v1126
        %v1128 = vld [vmem:[%s999] sm:$0xe]
        %v1129 = vld [vmem:[%s999 + $0x8] sm:$0xe]
        %v1130 = vld [vmem:[%s999 + $0x10] sm:$0xe]
        %v1131 = vld [vmem:[%s999 + $0x18] sm:$0xe]
        %v1132 = vld [vmem:[%s999 + $0x20] sm:$0xe]
        %v1133 = vld [vmem:[%s999 + $0x28] sm:$0xe]
        %v1134 = vld [vmem:[%s999 + $0x30] sm:$0xe]
        %v1135 = vld [vmem:[%s999 + $0x38] sm:$0xe]
        %v1152 = vrot.slane %v1128, 5
        %v1153 = vrot.slane %v1152, 4
        %v1154 = vrot.slane %v1008, 5
        %v1155 = vsel %vm782, %v1153, %v1154
        %v1156 = vrot.slane %v1129, 5
        %v1157 = vrot.slane %v1156, 4
        %v1158 = vrot.slane %v1009, 5
        %v1159 = vsel %vm782, %v1157, %v1158
        %v1160 = vrot.slane %v1130, 5
        %v1161 = vrot.slane %v1160, 4
        %v1162 = vrot.slane %v1010, 5
        %v1163 = vsel %vm782, %v1161, %v1162
        %v1164 = vrot.slane %v1131, 5
        %v1165 = vrot.slane %v1164, 4
        %v1166 = vrot.slane %v1011, 5
        %v1167 = vsel %vm782, %v1165, %v1166
        %v1168 = vrot.slane %v1132, 5
        %v1169 = vrot.slane %v1168, 4
        %v1170 = vrot.slane %v1012, 5
        %v1171 = vsel %vm782, %v1169, %v1170
        %v1172 = vrot.slane %v1133, 5
        %v1173 = vrot.slane %v1172, 4
        %v1174 = vrot.slane %v1013, 5
        %v1175 = vsel %vm782, %v1173, %v1174
        %v1176 = vrot.slane %v1134, 5
        %v1177 = vrot.slane %v1176, 4
        %v1178 = vrot.slane %v1014, 5
        %v1179 = vsel %vm782, %v1177, %v1178
        %v1180 = vrot.slane %v1135, 5
        %v1181 = vrot.slane %v1180, 4
        %v1182 = vrot.slane %v1015, 5
        %v1183 = vsel %vm782, %v1181, %v1182
        %v1192 = vunpack.c.l.b16 %v625
        %v1193 = vunpack.c.l.b16 %v626
        %v1194 = vunpack.c.l.b16 %v627
        %v1195 = vunpack.c.l.b16 %v628
        %v1196 = vunpack.c.l.b16 %v629
        %v1197 = vunpack.c.l.b16 %v630
        %v1198 = vunpack.c.l.b16 %v631
        %v1199 = vunpack.c.l.b16 %v632
        %v1200 = vpack.c.b16 %v1193, %v1192
        %v1201 = vpack.c.b16 %v1195, %v1194
        %v1202 = vpack.c.b16 %v1197, %v1196
        %v1203 = vpack.c.b16 %v1199, %v1198
        %v1204 = vunpack.c.l.b16 %v657
        %v1205 = vunpack.c.l.b16 %v671
        %v1206 = vunpack.c.l.b16 %v685
        %v1207 = vunpack.c.l.b16 %v699
        %v1208 = vunpack.c.l.b16 %v713
        %v1209 = vunpack.c.l.b16 %v727
        %v1210 = vunpack.c.l.b16 %v741
        %v1211 = vunpack.c.l.b16 %v755
        %v1212 = vpack.c.b16 %v1205, %v1204
        %v1213 = vpack.c.b16 %v1207, %v1206
        %v1214 = vpack.c.b16 %v1209, %v1208
        %v1215 = vpack.c.b16 %v1211, %v1210
        %1216 = vrot.lane.b32.xlu0 %v1212, 32
        %v1217 = vpop.permute.xlu0 %1216
        %1218 = vrot.lane.b32.xlu0 %v1213, 32
        %v1219 = vpop.permute.xlu0 %1218
        %1220 = vrot.lane.b32.xlu0 %v1214, 32
        %v1221 = vpop.permute.xlu0 %1220
        %1222 = vrot.lane.b32.xlu0 %v1215, 32
        %v1223 = vpop.permute.xlu0 %1222
        %v1224 = vunpack.c.l.b16 %v786
        %v1225 = vunpack.c.l.b16 %v790
        %v1226 = vunpack.c.l.b16 %v794
        %v1227 = vunpack.c.l.b16 %v798
        %v1228 = vunpack.c.l.b16 %v802
        %v1229 = vunpack.c.l.b16 %v806
        %v1230 = vunpack.c.l.b16 %v810
        %v1231 = vunpack.c.l.b16 %v814
        %v1232 = vpack.c.b16 %v1225, %v1224
        %v1233 = vpack.c.b16 %v1227, %v1226
        %v1234 = vpack.c.b16 %v1229, %v1228
        %v1235 = vpack.c.b16 %v1231, %v1230
        %1236 = vrot.lane.b32.xlu0 %v1232, 64
        %v1237 = vpop.permute.xlu0 %1236
        %1238 = vrot.lane.b32.xlu0 %v1233, 64
        %v1239 = vpop.permute.xlu0 %1238
        %1240 = vrot.lane.b32.xlu0 %v1234, 64
        %v1241 = vpop.permute.xlu0 %1240
        %1242 = vrot.lane.b32.xlu0 %v1235, 64
        %v1243 = vpop.permute.xlu0 %1242
        %v1252 = vunpack.c.l.b16 %v815
        %v1253 = vunpack.c.l.b16 %v816
        %v1254 = vunpack.c.l.b16 %v817
        %v1255 = vunpack.c.l.b16 %v818
        %v1256 = vunpack.c.l.b16 %v819
        %v1257 = vunpack.c.l.b16 %v820
        %v1258 = vunpack.c.l.b16 %v821
        %v1259 = vunpack.c.l.b16 %v822
        %v1260 = vpack.c.b16 %v1253, %v1252
        %v1261 = vpack.c.b16 %v1255, %v1254
        %v1262 = vpack.c.b16 %v1257, %v1256
        %v1263 = vpack.c.b16 %v1259, %v1258
        %1264 = vrot.lane.b32.xlu0 %v1260, 96
        %v1265 = vpop.permute.xlu0 %1264
        %1266 = vrot.lane.b32.xlu0 %v1261, 96
        %v1267 = vpop.permute.xlu0 %1266
        %1268 = vrot.lane.b32.xlu0 %v1262, 96
        %v1269 = vpop.permute.xlu0 %1268
        %1270 = vrot.lane.b32.xlu0 %v1263, 96
        %v1271 = vpop.permute.xlu0 %1270
        %v1272 = vunpack.c.l.b16 %v844
        %v1273 = vunpack.c.l.b16 %v858
        %v1274 = vunpack.c.l.b16 %v872
        %v1275 = vunpack.c.l.b16 %v886
        %v1276 = vunpack.c.l.b16 %v900
        %v1277 = vunpack.c.l.b16 %v914
        %v1278 = vunpack.c.l.b16 %v928
        %v1279 = vunpack.c.l.b16 %v942
        %v1280 = vpack.c.b16 %v1273, %v1272
        %v1281 = vpack.c.b16 %v1275, %v1274
        %v1282 = vpack.c.b16 %v1277, %v1276
        %v1283 = vpack.c.b16 %v1279, %v1278
        %v1284 = vunpack.c.l.b16 %v970
        %v1285 = vunpack.c.l.b16 %v974
        %v1286 = vunpack.c.l.b16 %v978
        %v1287 = vunpack.c.l.b16 %v982
        %v1288 = vunpack.c.l.b16 %v986
        %v1289 = vunpack.c.l.b16 %v990
        %v1290 = vunpack.c.l.b16 %v994
        %v1291 = vunpack.c.l.b16 %v998
        %v1292 = vpack.c.b16 %v1285, %v1284
        %v1293 = vpack.c.b16 %v1287, %v1286
        %v1294 = vpack.c.b16 %v1289, %v1288
        %v1295 = vpack.c.b16 %v1291, %v1290
        %1296 = vrot.lane.b32.xlu0 %v1292, 32
        %v1297 = vpop.permute.xlu0 %1296
        %1298 = vrot.lane.b32.xlu0 %v1293, 32
        %v1299 = vpop.permute.xlu0 %1298
        %1300 = vrot.lane.b32.xlu0 %v1294, 32
        %v1301 = vpop.permute.xlu0 %1300
        %1302 = vrot.lane.b32.xlu0 %v1295, 32
        %v1303 = vpop.permute.xlu0 %1302
        %v1312 = vunpack.c.l.b16 %v1000
        %v1313 = vunpack.c.l.b16 %v1001
        %v1314 = vunpack.c.l.b16 %v1002
        %v1315 = vunpack.c.l.b16 %v1003
        %v1316 = vunpack.c.l.b16 %v1004
        %v1317 = vunpack.c.l.b16 %v1005
        %v1318 = vunpack.c.l.b16 %v1006
        %v1319 = vunpack.c.l.b16 %v1007
        %v1320 = vpack.c.b16 %v1313, %v1312
        %v1321 = vpack.c.b16 %v1315, %v1314
        %v1322 = vpack.c.b16 %v1317, %v1316
        %v1323 = vpack.c.b16 %v1319, %v1318
        %1324 = vrot.lane.b32.xlu0 %v1320, 64
        %v1325 = vpop.permute.xlu0 %1324
        %1326 = vrot.lane.b32.xlu0 %v1321, 64
        %v1327 = vpop.permute.xlu0 %1326
        %1328 = vrot.lane.b32.xlu0 %v1322, 64
        %v1329 = vpop.permute.xlu0 %1328
        %1330 = vrot.lane.b32.xlu0 %v1323, 64
        %v1331 = vpop.permute.xlu0 %1330
        %v1332 = vunpack.c.l.b16 %v1029
        %v1333 = vunpack.c.l.b16 %v1043
        %v1334 = vunpack.c.l.b16 %v1057
        %v1335 = vunpack.c.l.b16 %v1071
        %v1336 = vunpack.c.l.b16 %v1085
        %v1337 = vunpack.c.l.b16 %v1099
        %v1338 = vunpack.c.l.b16 %v1113
        %v1339 = vunpack.c.l.b16 %v1127
        %v1340 = vpack.c.b16 %v1333, %v1332
        %v1341 = vpack.c.b16 %v1335, %v1334
        %v1342 = vpack.c.b16 %v1337, %v1336
        %v1343 = vpack.c.b16 %v1339, %v1338
        %1344 = vrot.lane.b32.xlu0 %v1340, 96
        %v1345 = vpop.permute.xlu0 %1344
        %1346 = vrot.lane.b32.xlu0 %v1341, 96
        %v1347 = vpop.permute.xlu0 %1346
        %1348 = vrot.lane.b32.xlu0 %v1342, 96
        %v1349 = vpop.permute.xlu0 %1348
        %1350 = vrot.lane.b32.xlu0 %v1343, 96
        %v1351 = vpop.permute.xlu0 %1350
        %v1352 = vunpack.c.l.b16 %v1155
        %v1353 = vunpack.c.l.b16 %v1159
        %v1354 = vunpack.c.l.b16 %v1163
        %v1355 = vunpack.c.l.b16 %v1167
        %v1356 = vunpack.c.l.b16 %v1171
        %v1357 = vunpack.c.l.b16 %v1175
        %v1358 = vunpack.c.l.b16 %v1179
        %v1359 = vunpack.c.l.b16 %v1183
        %v1360 = vpack.c.b16 %v1353, %v1352
        %v1361 = vpack.c.b16 %v1355, %v1354
        %v1362 = vpack.c.b16 %v1357, %v1356
        %v1363 = vpack.c.b16 %v1359, %v1358
        %vm1364 = vcmask 261120
        %v1367 = vsel %vm1364, %v1200, %v1217
        %v1370 = vsel %vm1364, %v1201, %v1219
        %v1373 = vsel %vm1364, %v1202, %v1221
        %v1376 = vsel %vm1364, %v1203, %v1223
        %vm1377 = vcmask 523264
        %v1379 = vsel %vm1377, %v1367, %v1237
        %v1381 = vsel %vm1377, %v1370, %v1239
        %v1383 = vsel %vm1377, %v1373, %v1241
        %v1385 = vsel %vm1377, %v1376, %v1243
        %vm1386 = vcmask 785408
        %v1388 = vsel %vm1386, %v1379, %v1265
        %v1391 = vsel %vm1386, %v1381, %v1267
        %v1394 = vsel %vm1386, %v1383, %v1269
        %v1397 = vsel %vm1386, %v1385, %v1271
        %v1401 = vsel %vm1364, %v1280, %v1297
        %v1404 = vsel %vm1364, %v1281, %v1299
        %v1407 = vsel %vm1364, %v1282, %v1301
        %v1410 = vsel %vm1364, %v1283, %v1303
        %v1412 = vsel %vm1377, %v1401, %v1325
        %v1414 = vsel %vm1377, %v1404, %v1327
        %v1416 = vsel %vm1377, %v1407, %v1329
        %v1418 = vsel %vm1377, %v1410, %v1331
        %v1420 = vsel %vm1386, %v1412, %v1345
        %v1423 = vsel %vm1386, %v1414, %v1347
        %v1426 = vsel %vm1386, %v1416, %v1349
        %v1429 = vsel %vm1386, %v1418, %v1351
        %v1431 = vld [vmem:[%s3] sm:$0xf]
        %v1432 = vld [vmem:[%s3 + $0x4] sm:$0xf]
        %v1433 = vld [vmem:[%s3 + $0x8] sm:$0xf]
        %v1434 = vld [vmem:[%s3 + $0xc] sm:$0xf]
        %v1435 = vld [vmem:[%s3 + $0x10] sm:$0xf]
        %v1436 = vld [vmem:[%s3 + $0x14] sm:$0xf]
        %v1437 = vld [vmem:[%s3 + $0x18] sm:$0xf]
        %v1438 = vld [vmem:[%s3 + $0x1c] sm:$0xf]
        %v1439 = vld [vmem:[%s3 + $0x20] sm:$0xf]
        %v1440 = vld [vmem:[%s3 + $0x24] sm:$0xf]
        %v1441 = vld [vmem:[%s3 + $0x28] sm:$0xf]
        %v1442 = vld [vmem:[%s3 + $0x2c] sm:$0xf]
        %v1443 = vld [vmem:[%s3 + $0x30] sm:$0xf]
        %v1444 = vld [vmem:[%s3 + $0x34] sm:$0xf]
        %v1445 = vld [vmem:[%s3 + $0x38] sm:$0xf]
        %v1446 = vld [vmem:[%s3 + $0x3c] sm:$0xf]
        %v1447 = vld [vmem:[%s3 + $0x40] sm:$0xf]
        %v1448 = vld [vmem:[%s3 + $0x44] sm:$0xf]
        %v1449 = vld [vmem:[%s3 + $0x48] sm:$0xf]
        %v1450 = vld [vmem:[%s3 + $0x4c] sm:$0xf]
        %v1451 = vld [vmem:[%s3 + $0x50] sm:$0xf]
        %v1452 = vld [vmem:[%s3 + $0x54] sm:$0xf]
        %v1453 = vld [vmem:[%s3 + $0x58] sm:$0xf]
        %v1454 = vld [vmem:[%s3 + $0x5c] sm:$0xf]
        %v1455 = vld [vmem:[%s3 + $0x60] sm:$0xf]
        %v1456 = vld [vmem:[%s3 + $0x64] sm:$0xf]
        %v1457 = vld [vmem:[%s3 + $0x68] sm:$0xf]
        %v1458 = vld [vmem:[%s3 + $0x6c] sm:$0xf]
        %v1459 = vld [vmem:[%s3 + $0x70] sm:$0xf]
        %v1460 = vld [vmem:[%s3 + $0x74] sm:$0xf]
        %v1461 = vld [vmem:[%s3 + $0x78] sm:$0xf]
        %v1462 = vld [vmem:[%s3 + $0x7c] sm:$0xf]
        %v1463 = vld [vmem:[%s3 + $0x80] sm:$0xf]
        %v1464 = vld [vmem:[%s3 + $0x84] sm:$0xf]
        %v1465 = vld [vmem:[%s3 + $0x88] sm:$0xf]
        %v1466 = vld [vmem:[%s3 + $0x8c] sm:$0xf]
        %v1467 = vld [vmem:[%s4] sm:$0x1]
        %v1469 = vlaneseq
        %v1470 = vshrl.u32 %v1469, 7
        %v1471 = vsub.s32 0, %v1470
        %v1472 = vrot.slane %v1467, %v1471
        %v1510 = vunpack.c.l.b16 %v1431
        %v1511 = vunpack.c.l.b16 %v1432
        %v1512 = vunpack.c.l.b16 %v1433
        %v1513 = vunpack.c.l.b16 %v1434
        %v1514 = vunpack.c.l.b16 %v1435
        %v1515 = vunpack.c.l.b16 %v1436
        %v1516 = vunpack.c.l.b16 %v1437
        %v1517 = vunpack.c.l.b16 %v1438
        %v1518 = vunpack.c.l.b16 %v1439
        %v1519 = vunpack.c.l.b16 %v1440
        %v1520 = vunpack.c.l.b16 %v1441
        %v1521 = vunpack.c.l.b16 %v1442
        %v1522 = vunpack.c.l.b16 %v1443
        %v1523 = vunpack.c.l.b16 %v1444
        %v1524 = vunpack.c.l.b16 %v1445
        %v1525 = vunpack.c.l.b16 %v1446
        %v1526 = vunpack.c.l.b16 %v1447
        %v1527 = vunpack.c.l.b16 %v1448
        %v1528 = vunpack.c.l.b16 %v1449
        %v1529 = vunpack.c.l.b16 %v1450
        %v1530 = vunpack.c.l.b16 %v1451
        %v1531 = vunpack.c.l.b16 %v1452
        %v1532 = vunpack.c.l.b16 %v1453
        %v1533 = vunpack.c.l.b16 %v1454
        %v1534 = vunpack.c.l.b16 %v1455
        %v1535 = vunpack.c.l.b16 %v1456
        %v1536 = vunpack.c.l.b16 %v1457
        %v1537 = vunpack.c.l.b16 %v1458
        %v1538 = vunpack.c.l.b16 %v1459
        %v1539 = vunpack.c.l.b16 %v1460
        %v1540 = vunpack.c.l.b16 %v1461
        %v1541 = vunpack.c.l.b16 %v1462
        %v1542 = vunpack.c.l.b16 %v1463
        %v1543 = vunpack.c.l.b16 %v1464
        %v1544 = vunpack.c.l.b16 %v1465
        %v1545 = vunpack.c.l.b16 %v1466
        %v1546 = vpack.c.b16 %v1511, %v1510
        %v1547 = vpack.c.b16 %v1513, %v1512
        %v1548 = vpack.c.b16 %v1515, %v1514
        %v1549 = vpack.c.b16 %v1517, %v1516
        %v1550 = vpack.c.b16 %v1519, %v1518
        %v1551 = vpack.c.b16 %v1521, %v1520
        %v1552 = vpack.c.b16 %v1523, %v1522
        %v1553 = vpack.c.b16 %v1525, %v1524
        %v1554 = vpack.c.b16 %v1527, %v1526
        %v1555 = vpack.c.b16 %v1529, %v1528
        %v1556 = vpack.c.b16 %v1531, %v1530
        %v1557 = vpack.c.b16 %v1533, %v1532
        %v1558 = vpack.c.b16 %v1535, %v1534
        %v1559 = vpack.c.b16 %v1537, %v1536
        %v1560 = vpack.c.b16 %v1539, %v1538
        %v1561 = vpack.c.b16 %v1541, %v1540
        %v1562 = vpack.c.b16 %v1543, %v1542
        %v1563 = vpack.c.b16 %v1545, %v1544
        %v1583 = vsel %vm1364, %v1360, 0
        %v1586 = vsel %vm1364, %v1361, 0
        %v1589 = vsel %vm1364, %v1362, 0
        %v1592 = vsel %vm1364, %v1363, 0
        %1594 = vmatprep.subr.bf16.mxu0 0
        %1595 = vmatpush1.bf16.msra.mxu0 %v1553
        %1596 = vmatprep.subr.bf16.mxu0 0
        %1597 = vmatpush1.bf16.msra.mxu0 %v1552
        %1598 = vmatprep.subr.bf16.mxu0 0
        %1599 = vmatpush1.bf16.msra.mxu0 %v1551
        %1600 = vmatprep.subr.bf16.mxu0 0
        %1601 = vmatpush1.bf16.msra.mxu0 %v1550
        %1602 = vmatprep.subr.bf16.mxu0 0
        %1603 = vmatpush1.bf16.msra.mxu0 %v1549
        %1604 = vmatprep.subr.bf16.mxu0 0
        %1605 = vmatpush1.bf16.msra.mxu0 %v1548
        %1606 = vmatprep.subr.bf16.mxu0 0
        %1607 = vmatpush1.bf16.msra.mxu0 %v1547
        %1608 = vmatprep.subr.bf16.mxu0 0
        %1609 = vmatpush1.bf16.msra.mxu0 %v1546
        %1610 = vmatprep.subr.bf16.mxu0 0
        %1611 = vmatpush2.bf16.msra.mxu0 %v1561
        %1612 = vmatprep.subr.bf16.mxu0 0
        %1613 = vmatpush2.bf16.msra.mxu0 %v1560
        %1614 = vmatprep.subr.bf16.mxu0 0
        %1615 = vmatpush2.bf16.msra.mxu0 %v1559
        %1616 = vmatprep.subr.bf16.mxu0 0
        %1617 = vmatpush2.bf16.msra.mxu0 %v1558
        %1618 = vmatprep.subr.bf16.mxu0 0
        %1619 = vmatpush2.bf16.msra.mxu0 %v1557
        %1620 = vmatprep.subr.bf16.mxu0 0
        %1621 = vmatpush2.bf16.msra.mxu0 %v1556
        %1622 = vmatprep.subr.bf16.mxu0 0
        %1623 = vmatpush2.bf16.msra.mxu0 %v1555
        %1624 = vmatprep.subr.bf16.mxu0 0
        %1625 = vmatpush2.bf16.msra.mxu0 %v1554
        %1626 = vmatprep.mubr.bf16.mxu0 %v1420
        %1627 = vmatmul.mubr.bf16.gmra.mxu0 %v1388
        %v1628 = vpop.f32.mrf.mxu0
        %v1629 = vadd.f32 %v1472, %v1628
        %v1630 = vpop.f32.mrf.mxu0
        %v1631 = vpop.f32.mrf.mxu0
        %v1632 = vadd.f32 %v1472, %v1631
        %v1633 = vpop.f32.mrf.mxu0
        %1634 = vmatprep.mubr.bf16.mxu0 %v1423
        %1635 = vmatmul.mubr.bf16.gmra.mxu0 %v1391
        %v1636 = vpop.f32.mrf.mxu0
        %v1637 = vadd.f32 %v1472, %v1636
        %v1638 = vpop.f32.mrf.mxu0
        %v1639 = vpop.f32.mrf.mxu0
        %v1640 = vadd.f32 %v1472, %v1639
        %v1641 = vpop.f32.mrf.mxu0
        %1642 = vmatprep.mubr.bf16.mxu0 %v1426
        %1643 = vmatmul.mubr.bf16.gmra.mxu0 %v1394
        %v1644 = vpop.f32.mrf.mxu0
        %v1645 = vadd.f32 %v1472, %v1644
        %v1646 = vpop.f32.mrf.mxu0
        %v1647 = vpop.f32.mrf.mxu0
        %v1648 = vadd.f32 %v1472, %v1647
        %v1649 = vpop.f32.mrf.mxu0
        %1650 = vmatprep.mubr.bf16.mxu0 %v1429
        %1651 = vmatmul.mubr.bf16.gmra.mxu0 %v1397
        %v1652 = vpop.f32.mrf.mxu0
        %v1653 = vadd.f32 %v1472, %v1652
        %v1654 = vpop.f32.mrf.mxu0
        %v1655 = vpop.f32.mrf.mxu0
        %v1656 = vadd.f32 %v1472, %v1655
        %v1657 = vpop.f32.mrf.mxu0
        %1658 = vdwg.mxu0
        %1659 = vmatprep.subr.bf16.mxu0 0
        %1660 = vmatpush1.bf16.msra.mxu0 0
        %1661 = vmatprep.subr.bf16.mxu0 0
        %1662 = vmatpush1.bf16.msra.mxu0 0
        %1663 = vmatprep.subr.bf16.mxu0 0
        %1664 = vmatpush1.bf16.msra.mxu0 0
        %1665 = vmatprep.subr.bf16.mxu0 0
        %1666 = vmatpush1.bf16.msra.mxu0 0
        %1667 = vmatprep.subr.bf16.mxu0 0
        %1668 = vmatpush1.bf16.msra.mxu0 0
        %1669 = vmatprep.subr.bf16.mxu0 0
        %1670 = vmatpush1.bf16.msra.mxu0 0
        %1671 = vmatprep.subr.bf16.mxu0 0
        %1672 = vmatpush1.bf16.msra.mxu0 %v1563
        %1673 = vmatprep.subr.bf16.mxu0 0
        %1674 = vmatpush1.bf16.msra.mxu0 %v1562
        %1675 = vmatprep.subr.bf16.mxu0 0
        %1676 = vmatpush2.bf16.msra.mxu0 0
        %1677 = vmatprep.subr.bf16.mxu0 0
        %1678 = vmatpush2.bf16.msra.mxu0 0
        %1679 = vmatprep.subr.bf16.mxu0 0
        %1680 = vmatpush2.bf16.msra.mxu0 0
        %1681 = vmatprep.subr.bf16.mxu0 0
        %1682 = vmatpush2.bf16.msra.mxu0 0
        %1683 = vmatprep.subr.bf16.mxu0 0
        %1684 = vmatpush2.bf16.msra.mxu0 0
        %1685 = vmatprep.subr.bf16.mxu0 0
        %1686 = vmatpush2.bf16.msra.mxu0 0
        %1687 = vmatprep.subr.bf16.mxu0 0
        %1688 = vmatpush2.bf16.msra.mxu0 0
        %1689 = vmatprep.subr.bf16.mxu0 0
        %1690 = vmatpush2.bf16.msra.mxu0 0
        %1691 = vmatprep.mubr.bf16.mxu0 0
        %1692 = vmatmul.mubr.bf16.gmra.mxu0 %v1583
        %v1693 = vpop.f32.mrf.mxu0
        %v1694 = vadd.f32 %v1629, %v1693
        %v1695 = vpop.f32.mrf.mxu0
        %v1696 = vpop.f32.mrf.mxu0
        %v1697 = vadd.f32 %v1632, %v1696
        %v1698 = vpop.f32.mrf.mxu0
        %1699 = vmatprep.mubr.bf16.mxu0 0
        %1700 = vmatmul.mubr.bf16.gmra.mxu0 %v1586
        %v1701 = vpop.f32.mrf.mxu0
        %v1702 = vadd.f32 %v1637, %v1701
        %v1703 = vpop.f32.mrf.mxu0
        %v1704 = vpop.f32.mrf.mxu0
        %v1705 = vadd.f32 %v1640, %v1704
        %v1706 = vpop.f32.mrf.mxu0
        %1707 = vmatprep.mubr.bf16.mxu0 0
        %1708 = vmatmul.mubr.bf16.gmra.mxu0 %v1589
        %v1709 = vpop.f32.mrf.mxu0
        %v1710 = vadd.f32 %v1645, %v1709
        %v1711 = vpop.f32.mrf.mxu0
        %v1712 = vpop.f32.mrf.mxu0
        %v1713 = vadd.f32 %v1648, %v1712
        %v1714 = vpop.f32.mrf.mxu0
        %1715 = vmatprep.mubr.bf16.mxu0 0
        %1716 = vmatmul.mubr.bf16.gmra.mxu0 %v1592
        %v1717 = vpop.f32.mrf.mxu0
        %v1718 = vadd.f32 %v1653, %v1717
        %v1719 = vpop.f32.mrf.mxu0
        %v1720 = vpop.f32.mrf.mxu0
        %v1721 = vadd.f32 %v1656, %v1720
        %v1722 = vpop.f32.mrf.mxu0
        %1723 = vdwg.mxu0
        %v1724 = vmax.f32 %v1694, 0.0
        %v1725 = vmax.f32 %v1697, 0.0
        %v1726 = vmax.f32 %v1702, 0.0
        %v1727 = vmax.f32 %v1705, 0.0
        %v1728 = vmax.f32 %v1710, 0.0
        %v1729 = vmax.f32 %v1713, 0.0
        %v1730 = vmax.f32 %v1718, 0.0
        %v1731 = vmax.f32 %v1721, 0.0
        %v1732 = vpack.c.bf16 %v1725, %v1724
        %v1733 = vpack.c.bf16 %v1727, %v1726
        %v1734 = vpack.c.bf16 %v1729, %v1728
        %v1735 = vpack.c.bf16 %v1731, %v1730
        %vm1736 = vcmask 519168
        %1737 = vst.msk [vmem:[#allocation3] sm:$0xf] %vm1736, 0
        %vm1738 = vcmask 516096
        %1739 = vst.msk [vmem:[#allocation3 + $0x4] sm:$0x1] %vm1738, 0
        %1740 = vst.msk [vmem:[#allocation3 + $0x8] sm:$0xf] %vm1736, 0
        %1741 = vst.msk [vmem:[#allocation3 + $0xc] sm:$0x1] %vm1738, 0
        %1742 = vst.msk [vmem:[#allocation3 + $0x10] sm:$0xf] %vm1736, 0
        %1743 = vst.msk [vmem:[#allocation3 + $0x14] sm:$0x1] %vm1738, 0
        %1744 = vst.msk [vmem:[#allocation3 + $0x18] sm:$0xf] %vm1736, 0
        %1745 = vst.msk [vmem:[#allocation3 + $0x1c] sm:$0x1] %vm1738, 0
        %1746 = vst.msk [vmem:[#allocation3 + $0x20] sm:$0xf] %vm1736, 0
        %1747 = vst.msk [vmem:[#allocation3 + $0x24] sm:$0x1] %vm1738, 0
        %1748 = vst.msk [vmem:[#allocation3 + $0x28] sm:$0xf] %vm1736, 0
        %1749 = vst.msk [vmem:[#allocation3 + $0x2c] sm:$0x1] %vm1738, 0
        %1750 = vst.msk [vmem:[#allocation3 + $0x30] sm:$0xf] %vm1736, 0
        %1751 = vst.msk [vmem:[#allocation3 + $0x34] sm:$0x1] %vm1738, 0
        %1752 = vst.msk [vmem:[#allocation3 + $0x38] sm:$0xf] %vm1736, 0
        %1753 = vst.msk [vmem:[#allocation3 + $0x3c] sm:$0x1] %vm1738, 0
        %1754 = vst.msk [vmem:[#allocation3 + $0x40] sm:$0xf] %vm1736, 0
        %1755 = vst.msk [vmem:[#allocation3 + $0x44] sm:$0x1] %vm1738, 0
        %1756 = vst.msk [vmem:[#allocation3 + $0x48] sm:$0xf] %vm1736, 0
        %1757 = vst.msk [vmem:[#allocation3 + $0x4c] sm:$0x1] %vm1738, 0
        %v1762 = vunpack.c.l.b16 %v1732
        %v1763 = vunpack.c.h.b16 %v1732
        %v1764 = vunpack.c.l.b16 %v1733
        %v1765 = vunpack.c.h.b16 %v1733
        %v1766 = vunpack.c.l.b16 %v1734
        %v1767 = vunpack.c.h.b16 %v1734
        %v1768 = vunpack.c.l.b16 %v1735
        %v1769 = vunpack.c.h.b16 %v1735
        %v1770 = vpack.c.b16 %v1762, %v1762
        %v1771 = vpack.c.b16 %v1763, %v1763
        %v1772 = vpack.c.b16 %v1764, %v1764
        %v1773 = vpack.c.b16 %v1765, %v1765
        %v1774 = vpack.c.b16 %v1766, %v1766
        %v1775 = vpack.c.b16 %v1767, %v1767
        %v1776 = vpack.c.b16 %v1768, %v1768
        %v1777 = vpack.c.b16 %v1769, %v1769
        %v1779 = vshrl.u32 %v1770, 16
        %v1781 = vrot.slane %v1779, 7
        %v1782 = vshll.u32 %v1770, 16
        %v1784 = vor.u32 %v1781, %v1782
        %v1785 = vrot.slane %v1781, 4
        %v1787 = vshrl.u32 %v1771, 16
        %v1789 = vrot.slane %v1787, 7
        %v1790 = vshll.u32 %v1771, 16
        %v1792 = vor.u32 %v1789, %v1790
        %v1793 = vrot.slane %v1789, 4
        %v1795 = vshrl.u32 %v1772, 16
        %v1797 = vrot.slane %v1795, 7
        %v1798 = vshll.u32 %v1772, 16
        %v1800 = vor.u32 %v1797, %v1798
        %v1801 = vrot.slane %v1797, 4
        %v1803 = vshrl.u32 %v1773, 16
        %v1805 = vrot.slane %v1803, 7
        %v1806 = vshll.u32 %v1773, 16
        %v1808 = vor.u32 %v1805, %v1806
        %v1809 = vrot.slane %v1805, 4
        %v1811 = vshrl.u32 %v1774, 16
        %v1813 = vrot.slane %v1811, 7
        %v1814 = vshll.u32 %v1774, 16
        %v1816 = vor.u32 %v1813, %v1814
        %v1817 = vrot.slane %v1813, 4
        %v1819 = vshrl.u32 %v1775, 16
        %v1821 = vrot.slane %v1819, 7
        %v1822 = vshll.u32 %v1775, 16
        %v1824 = vor.u32 %v1821, %v1822
        %v1825 = vrot.slane %v1821, 4
        %v1827 = vshrl.u32 %v1776, 16
        %v1829 = vrot.slane %v1827, 7
        %v1830 = vshll.u32 %v1776, 16
        %v1832 = vor.u32 %v1829, %v1830
        %v1833 = vrot.slane %v1829, 4
        %v1835 = vshrl.u32 %v1777, 16
        %v1837 = vrot.slane %v1835, 7
        %v1838 = vshll.u32 %v1777, 16
        %v1840 = vor.u32 %v1837, %v1838
        %v1841 = vrot.slane %v1837, 4
        %s1858 = scalar_lea.vmem [#allocation3], 8
        %vm1859 = vcmask 519168
        %vm1860 = vmand %vm1859, %vm572
        %v1861 = vld [vmem:[%s1858] sm:$0xf]
        %v1862 = vsel %vm1860, %v1784, %v1861
        %1863 = vst [vmem:[%s1858] sm:$0xf] %v1862
        %vm1864 = vcmask 516096
        %vm1865 = vmand %vm1864, %vm578
        %v1866 = vld [vmem:[%s1858 + $0x4] sm:$0x1]
        %v1867 = vsel %vm1865, %v1785, %v1866
        %1868 = vst [vmem:[%s1858 + $0x4] sm:$0x1] %v1867
        %v1869 = vld [vmem:[%s1858 + $0x8] sm:$0xf]
        %v1870 = vsel %vm1860, %v1792, %v1869
        %1871 = vst [vmem:[%s1858 + $0x8] sm:$0xf] %v1870
        %v1872 = vld [vmem:[%s1858 + $0xc] sm:$0x1]
        %v1873 = vsel %vm1865, %v1793, %v1872
        %1874 = vst [vmem:[%s1858 + $0xc] sm:$0x1] %v1873
        %v1875 = vld [vmem:[%s1858 + $0x10] sm:$0xf]
        %v1876 = vsel %vm1860, %v1800, %v1875
        %1877 = vst [vmem:[%s1858 + $0x10] sm:$0xf] %v1876
        %v1878 = vld [vmem:[%s1858 + $0x14] sm:$0x1]
        %v1879 = vsel %vm1865, %v1801, %v1878
        %1880 = vst [vmem:[%s1858 + $0x14] sm:$0x1] %v1879
        %v1881 = vld [vmem:[%s1858 + $0x18] sm:$0xf]
        %v1882 = vsel %vm1860, %v1808, %v1881
        %1883 = vst [vmem:[%s1858 + $0x18] sm:$0xf] %v1882
        %v1884 = vld [vmem:[%s1858 + $0x1c] sm:$0x1]
        %v1885 = vsel %vm1865, %v1809, %v1884
        %1886 = vst [vmem:[%s1858 + $0x1c] sm:$0x1] %v1885
        %v1887 = vld [vmem:[%s1858 + $0x20] sm:$0xf]
        %v1888 = vsel %vm1860, %v1816, %v1887
        %1889 = vst [vmem:[%s1858 + $0x20] sm:$0xf] %v1888
        %v1890 = vld [vmem:[%s1858 + $0x24] sm:$0x1]
        %v1891 = vsel %vm1865, %v1817, %v1890
        %1892 = vst [vmem:[%s1858 + $0x24] sm:$0x1] %v1891
        %v1893 = vld [vmem:[%s1858 + $0x28] sm:$0xf]
        %v1894 = vsel %vm1860, %v1824, %v1893
        %1895 = vst [vmem:[%s1858 + $0x28] sm:$0xf] %v1894
        %v1896 = vld [vmem:[%s1858 + $0x2c] sm:$0x1]
        %v1897 = vsel %vm1865, %v1825, %v1896
        %1898 = vst [vmem:[%s1858 + $0x2c] sm:$0x1] %v1897
        %v1899 = vld [vmem:[%s1858 + $0x30] sm:$0xf]
        %v1900 = vsel %vm1860, %v1832, %v1899
        %1901 = vst [vmem:[%s1858 + $0x30] sm:$0xf] %v1900
        %v1902 = vld [vmem:[%s1858 + $0x34] sm:$0x1]
        %v1903 = vsel %vm1865, %v1833, %v1902
        %1904 = vst [vmem:[%s1858 + $0x34] sm:$0x1] %v1903
        %v1905 = vld [vmem:[%s1858 + $0x38] sm:$0xf]
        %v1906 = vsel %vm1860, %v1840, %v1905
        %1907 = vst [vmem:[%s1858 + $0x38] sm:$0xf] %v1906
        %v1908 = vld [vmem:[%s1858 + $0x3c] sm:$0x1]
        %v1909 = vsel %vm1865, %v1841, %v1908
        %1910 = vst [vmem:[%s1858 + $0x3c] sm:$0x1] %v1909
        %v1911 = vld [vmem:[#allocation3] sm:$0xf]
        %v1912 = vld [vmem:[#allocation3 + $0x8] sm:$0xf]
        %v1913 = vld [vmem:[#allocation3 + $0x10] sm:$0xf]
        %v1914 = vld [vmem:[#allocation3 + $0x18] sm:$0xf]
        %v1915 = vld [vmem:[#allocation3 + $0x20] sm:$0xf]
        %v1916 = vld [vmem:[#allocation3 + $0x28] sm:$0xf]
        %v1917 = vld [vmem:[#allocation3 + $0x30] sm:$0xf]
        %v1918 = vld [vmem:[#allocation3 + $0x38] sm:$0xf]
        %v1919 = vld [vmem:[#allocation3 + $0x4] sm:$0x1]
        %v1920 = vld [vmem:[#allocation3 + $0xc] sm:$0x1]
        %v1921 = vld [vmem:[#allocation3 + $0x14] sm:$0x1]
        %v1922 = vld [vmem:[#allocation3 + $0x1c] sm:$0x1]
        %v1923 = vld [vmem:[#allocation3 + $0x24] sm:$0x1]
        %v1924 = vld [vmem:[#allocation3 + $0x2c] sm:$0x1]
        %v1925 = vld [vmem:[#allocation3 + $0x34] sm:$0x1]
        %v1926 = vld [vmem:[#allocation3 + $0x3c] sm:$0x1]
        %v1928 = vshrl.u32 %v1911, 16
        %v1930 = vrot.slane %v1928, 4
        %v1931 = vshll.u32 %v1911, 16
        %v1933 = vrot.slane %v1931, 5
        %v1934 = vor.u32 %v1930, %v1933
        %v1935 = vrot.slane %v1934, 4
        %v1937 = vshll.u32 %v1919, 16
        %v1939 = vrot.slane %v1937, 5
        %v1940 = vsel %vm643, %v1935, %v1939
        %v1942 = vshrl.u32 %v1912, 16
        %v1944 = vrot.slane %v1942, 4
        %v1945 = vshll.u32 %v1912, 16
        %v1947 = vrot.slane %v1945, 5
        %v1948 = vor.u32 %v1944, %v1947
        %v1949 = vrot.slane %v1948, 4
        %v1951 = vshll.u32 %v1920, 16
        %v1953 = vrot.slane %v1951, 5
        %v1954 = vsel %vm643, %v1949, %v1953
        %v1956 = vshrl.u32 %v1913, 16
        %v1958 = vrot.slane %v1956, 4
        %v1959 = vshll.u32 %v1913, 16
        %v1961 = vrot.slane %v1959, 5
        %v1962 = vor.u32 %v1958, %v1961
        %v1963 = vrot.slane %v1962, 4
        %v1965 = vshll.u32 %v1921, 16
        %v1967 = vrot.slane %v1965, 5
        %v1968 = vsel %vm643, %v1963, %v1967
        %v1970 = vshrl.u32 %v1914, 16
        %v1972 = vrot.slane %v1970, 4
        %v1973 = vshll.u32 %v1914, 16
        %v1975 = vrot.slane %v1973, 5
        %v1976 = vor.u32 %v1972, %v1975
        %v1977 = vrot.slane %v1976, 4
        %v1979 = vshll.u32 %v1922, 16
        %v1981 = vrot.slane %v1979, 5
        %v1982 = vsel %vm643, %v1977, %v1981
        %v1984 = vshrl.u32 %v1915, 16
        %v1986 = vrot.slane %v1984, 4
        %v1987 = vshll.u32 %v1915, 16
        %v1989 = vrot.slane %v1987, 5
        %v1990 = vor.u32 %v1986, %v1989
        %v1991 = vrot.slane %v1990, 4
        %v1993 = vshll.u32 %v1923, 16
        %v1995 = vrot.slane %v1993, 5
        %v1996 = vsel %vm643, %v1991, %v1995
        %v1998 = vshrl.u32 %v1916, 16
        %v2000 = vrot.slane %v1998, 4
        %v2001 = vshll.u32 %v1916, 16
        %v2003 = vrot.slane %v2001, 5
        %v2004 = vor.u32 %v2000, %v2003
        %v2005 = vrot.slane %v2004, 4
        %v2007 = vshll.u32 %v1924, 16
        %v2009 = vrot.slane %v2007, 5
        %v2010 = vsel %vm643, %v2005, %v2009
        %v2012 = vshrl.u32 %v1917, 16
        %v2014 = vrot.slane %v2012, 4
        %v2015 = vshll.u32 %v1917, 16
        %v2017 = vrot.slane %v2015, 5
        %v2018 = vor.u32 %v2014, %v2017
        %v2019 = vrot.slane %v2018, 4
        %v2021 = vshll.u32 %v1925, 16
        %v2023 = vrot.slane %v2021, 5
        %v2024 = vsel %vm643, %v2019, %v2023
        %v2026 = vshrl.u32 %v1918, 16
        %v2028 = vrot.slane %v2026, 4
        %v2029 = vshll.u32 %v1918, 16
        %v2031 = vrot.slane %v2029, 5
        %v2032 = vor.u32 %v2028, %v2031
        %v2033 = vrot.slane %v2032, 4
        %v2035 = vshll.u32 %v1926, 16
        %v2037 = vrot.slane %v2035, 5
        %v2038 = vsel %vm643, %v2033, %v2037
        %v2039 = vld [vmem:[#allocation3] sm:$0xe]
        %v2040 = vld [vmem:[#allocation3 + $0x8] sm:$0xe]
        %v2041 = vld [vmem:[#allocation3 + $0x10] sm:$0xe]
        %v2042 = vld [vmem:[#allocation3 + $0x18] sm:$0xe]
        %v2043 = vld [vmem:[#allocation3 + $0x20] sm:$0xe]
        %v2044 = vld [vmem:[#allocation3 + $0x28] sm:$0xe]
        %v2045 = vld [vmem:[#allocation3 + $0x30] sm:$0xe]
        %v2046 = vld [vmem:[#allocation3 + $0x38] sm:$0xe]
        %v2063 = vrot.slane %v2039, 5
        %v2064 = vrot.slane %v2063, 4
        %v2065 = vrot.slane %v1919, 5
        %v2066 = vsel %vm782, %v2064, %v2065
        %v2067 = vrot.slane %v2040, 5
        %v2068 = vrot.slane %v2067, 4
        %v2069 = vrot.slane %v1920, 5
        %v2070 = vsel %vm782, %v2068, %v2069
        %v2071 = vrot.slane %v2041, 5
        %v2072 = vrot.slane %v2071, 4
        %v2073 = vrot.slane %v1921, 5
        %v2074 = vsel %vm782, %v2072, %v2073
        %v2075 = vrot.slane %v2042, 5
        %v2076 = vrot.slane %v2075, 4
        %v2077 = vrot.slane %v1922, 5
        %v2078 = vsel %vm782, %v2076, %v2077
        %v2079 = vrot.slane %v2043, 5
        %v2080 = vrot.slane %v2079, 4
        %v2081 = vrot.slane %v1923, 5
        %v2082 = vsel %vm782, %v2080, %v2081
        %v2083 = vrot.slane %v2044, 5
        %v2084 = vrot.slane %v2083, 4
        %v2085 = vrot.slane %v1924, 5
        %v2086 = vsel %vm782, %v2084, %v2085
        %v2087 = vrot.slane %v2045, 5
        %v2088 = vrot.slane %v2087, 4
        %v2089 = vrot.slane %v1925, 5
        %v2090 = vsel %vm782, %v2088, %v2089
        %v2091 = vrot.slane %v2046, 5
        %v2092 = vrot.slane %v2091, 4
        %v2093 = vrot.slane %v1926, 5
        %v2094 = vsel %vm782, %v2092, %v2093
        %v2095 = vld [vmem:[%s1858] sm:$0xf]
        %v2096 = vld [vmem:[%s1858 + $0x8] sm:$0xf]
        %v2097 = vld [vmem:[%s1858 + $0x10] sm:$0xf]
        %v2098 = vld [vmem:[%s1858 + $0x18] sm:$0xf]
        %v2099 = vld [vmem:[%s1858 + $0x20] sm:$0xf]
        %v2100 = vld [vmem:[%s1858 + $0x28] sm:$0xf]
        %v2101 = vld [vmem:[%s1858 + $0x30] sm:$0xf]
        %v2102 = vld [vmem:[%s1858 + $0x38] sm:$0xf]
        %v2103 = vld [vmem:[%s1858 + $0x4] sm:$0x1]
        %v2104 = vld [vmem:[%s1858 + $0xc] sm:$0x1]
        %v2105 = vld [vmem:[%s1858 + $0x14] sm:$0x1]
        %v2106 = vld [vmem:[%s1858 + $0x1c] sm:$0x1]
        %v2107 = vld [vmem:[%s1858 + $0x24] sm:$0x1]
        %v2108 = vld [vmem:[%s1858 + $0x2c] sm:$0x1]
        %v2109 = vld [vmem:[%s1858 + $0x34] sm:$0x1]
        %v2110 = vld [vmem:[%s1858 + $0x3c] sm:$0x1]
        %v2112 = vshrl.u32 %v2095, 16
        %v2114 = vrot.slane %v2112, 4
        %v2115 = vshll.u32 %v2095, 16
        %v2117 = vrot.slane %v2115, 5
        %v2118 = vor.u32 %v2114, %v2117
        %v2119 = vrot.slane %v2118, 4
        %v2121 = vshll.u32 %v2103, 16
        %v2123 = vrot.slane %v2121, 5
        %v2124 = vsel %vm643, %v2119, %v2123
        %v2126 = vshrl.u32 %v2096, 16
        %v2128 = vrot.slane %v2126, 4
        %v2129 = vshll.u32 %v2096, 16
        %v2131 = vrot.slane %v2129, 5
        %v2132 = vor.u32 %v2128, %v2131
        %v2133 = vrot.slane %v2132, 4
        %v2135 = vshll.u32 %v2104, 16
        %v2137 = vrot.slane %v2135, 5
        %v2138 = vsel %vm643, %v2133, %v2137
        %v2140 = vshrl.u32 %v2097, 16
        %v2142 = vrot.slane %v2140, 4
        %v2143 = vshll.u32 %v2097, 16
        %v2145 = vrot.slane %v2143, 5
        %v2146 = vor.u32 %v2142, %v2145
        %v2147 = vrot.slane %v2146, 4
        %v2149 = vshll.u32 %v2105, 16
        %v2151 = vrot.slane %v2149, 5
        %v2152 = vsel %vm643, %v2147, %v2151
        %v2154 = vshrl.u32 %v2098, 16
        %v2156 = vrot.slane %v2154, 4
        %v2157 = vshll.u32 %v2098, 16
        %v2159 = vrot.slane %v2157, 5
        %v2160 = vor.u32 %v2156, %v2159
        %v2161 = vrot.slane %v2160, 4
        %v2163 = vshll.u32 %v2106, 16
        %v2165 = vrot.slane %v2163, 5
        %v2166 = vsel %vm643, %v2161, %v2165
        %v2168 = vshrl.u32 %v2099, 16
        %v2170 = vrot.slane %v2168, 4
        %v2171 = vshll.u32 %v2099, 16
        %v2173 = vrot.slane %v2171, 5
        %v2174 = vor.u32 %v2170, %v2173
        %v2175 = vrot.slane %v2174, 4
        %v2177 = vshll.u32 %v2107, 16
        %v2179 = vrot.slane %v2177, 5
        %v2180 = vsel %vm643, %v2175, %v2179
        %v2182 = vshrl.u32 %v2100, 16
        %v2184 = vrot.slane %v2182, 4
        %v2185 = vshll.u32 %v2100, 16
        %v2187 = vrot.slane %v2185, 5
        %v2188 = vor.u32 %v2184, %v2187
        %v2189 = vrot.slane %v2188, 4
        %v2191 = vshll.u32 %v2108, 16
        %v2193 = vrot.slane %v2191, 5
        %v2194 = vsel %vm643, %v2189, %v2193
        %v2196 = vshrl.u32 %v2101, 16
        %v2198 = vrot.slane %v2196, 4
        %v2199 = vshll.u32 %v2101, 16
        %v2201 = vrot.slane %v2199, 5
        %v2202 = vor.u32 %v2198, %v2201
        %v2203 = vrot.slane %v2202, 4
        %v2205 = vshll.u32 %v2109, 16
        %v2207 = vrot.slane %v2205, 5
        %v2208 = vsel %vm643, %v2203, %v2207
        %v2210 = vshrl.u32 %v2102, 16
        %v2212 = vrot.slane %v2210, 4
        %v2213 = vshll.u32 %v2102, 16
        %v2215 = vrot.slane %v2213, 5
        %v2216 = vor.u32 %v2212, %v2215
        %v2217 = vrot.slane %v2216, 4
        %v2219 = vshll.u32 %v2110, 16
        %v2221 = vrot.slane %v2219, 5
        %v2222 = vsel %vm643, %v2217, %v2221
        %v2223 = vld [vmem:[%s1858] sm:$0xe]
        %v2224 = vld [vmem:[%s1858 + $0x8] sm:$0xe]
        %v2225 = vld [vmem:[%s1858 + $0x10] sm:$0xe]
        %v2226 = vld [vmem:[%s1858 + $0x18] sm:$0xe]
        %v2227 = vld [vmem:[%s1858 + $0x20] sm:$0xe]
        %v2228 = vld [vmem:[%s1858 + $0x28] sm:$0xe]
        %v2229 = vld [vmem:[%s1858 + $0x30] sm:$0xe]
        %v2230 = vld [vmem:[%s1858 + $0x38] sm:$0xe]
        %v2247 = vrot.slane %v2223, 5
        %v2248 = vrot.slane %v2247, 4
        %v2249 = vrot.slane %v2103, 5
        %v2250 = vsel %vm782, %v2248, %v2249
        %v2251 = vrot.slane %v2224, 5
        %v2252 = vrot.slane %v2251, 4
        %v2253 = vrot.slane %v2104, 5
        %v2254 = vsel %vm782, %v2252, %v2253
        %v2255 = vrot.slane %v2225, 5
        %v2256 = vrot.slane %v2255, 4
        %v2257 = vrot.slane %v2105, 5
        %v2258 = vsel %vm782, %v2256, %v2257
        %v2259 = vrot.slane %v2226, 5
        %v2260 = vrot.slane %v2259, 4
        %v2261 = vrot.slane %v2106, 5
        %v2262 = vsel %vm782, %v2260, %v2261
        %v2263 = vrot.slane %v2227, 5
        %v2264 = vrot.slane %v2263, 4
        %v2265 = vrot.slane %v2107, 5
        %v2266 = vsel %vm782, %v2264, %v2265
        %v2267 = vrot.slane %v2228, 5
        %v2268 = vrot.slane %v2267, 4
        %v2269 = vrot.slane %v2108, 5
        %v2270 = vsel %vm782, %v2268, %v2269
        %v2271 = vrot.slane %v2229, 5
        %v2272 = vrot.slane %v2271, 4
        %v2273 = vrot.slane %v2109, 5
        %v2274 = vsel %vm782, %v2272, %v2273
        %v2275 = vrot.slane %v2230, 5
        %v2276 = vrot.slane %v2275, 4
        %v2277 = vrot.slane %v2110, 5
        %v2278 = vsel %vm782, %v2276, %v2277
        %s2279 = scalar_lea.vmem [#allocation3], 16
        %v2280 = vld [vmem:[%s2279] sm:$0xf]
        %v2281 = vld [vmem:[%s2279 + $0x8] sm:$0xf]
        %v2282 = vld [vmem:[%s2279 + $0x10] sm:$0xf]
        %v2283 = vld [vmem:[%s2279 + $0x18] sm:$0xf]
        %v2284 = vld [vmem:[%s2279 + $0x20] sm:$0xf]
        %v2285 = vld [vmem:[%s2279 + $0x28] sm:$0xf]
        %v2286 = vld [vmem:[%s2279 + $0x30] sm:$0xf]
        %v2287 = vld [vmem:[%s2279 + $0x38] sm:$0xf]
        %v2288 = vld [vmem:[%s2279 + $0x4] sm:$0x1]
        %v2289 = vld [vmem:[%s2279 + $0xc] sm:$0x1]
        %v2290 = vld [vmem:[%s2279 + $0x14] sm:$0x1]
        %v2291 = vld [vmem:[%s2279 + $0x1c] sm:$0x1]
        %v2292 = vld [vmem:[%s2279 + $0x24] sm:$0x1]
        %v2293 = vld [vmem:[%s2279 + $0x2c] sm:$0x1]
        %v2294 = vld [vmem:[%s2279 + $0x34] sm:$0x1]
        %v2295 = vld [vmem:[%s2279 + $0x3c] sm:$0x1]
        %v2297 = vshrl.u32 %v2280, 16
        %v2299 = vrot.slane %v2297, 4
        %v2300 = vshll.u32 %v2280, 16
        %v2302 = vrot.slane %v2300, 5
        %v2303 = vor.u32 %v2299, %v2302
        %v2304 = vrot.slane %v2303, 4
        %v2306 = vshll.u32 %v2288, 16
        %v2308 = vrot.slane %v2306, 5
        %v2309 = vsel %vm643, %v2304, %v2308
        %v2311 = vshrl.u32 %v2281, 16
        %v2313 = vrot.slane %v2311, 4
        %v2314 = vshll.u32 %v2281, 16
        %v2316 = vrot.slane %v2314, 5
        %v2317 = vor.u32 %v2313, %v2316
        %v2318 = vrot.slane %v2317, 4
        %v2320 = vshll.u32 %v2289, 16
        %v2322 = vrot.slane %v2320, 5
        %v2323 = vsel %vm643, %v2318, %v2322
        %v2325 = vshrl.u32 %v2282, 16
        %v2327 = vrot.slane %v2325, 4
        %v2328 = vshll.u32 %v2282, 16
        %v2330 = vrot.slane %v2328, 5
        %v2331 = vor.u32 %v2327, %v2330
        %v2332 = vrot.slane %v2331, 4
        %v2334 = vshll.u32 %v2290, 16
        %v2336 = vrot.slane %v2334, 5
        %v2337 = vsel %vm643, %v2332, %v2336
        %v2339 = vshrl.u32 %v2283, 16
        %v2341 = vrot.slane %v2339, 4
        %v2342 = vshll.u32 %v2283, 16
        %v2344 = vrot.slane %v2342, 5
        %v2345 = vor.u32 %v2341, %v2344
        %v2346 = vrot.slane %v2345, 4
        %v2348 = vshll.u32 %v2291, 16
        %v2350 = vrot.slane %v2348, 5
        %v2351 = vsel %vm643, %v2346, %v2350
        %v2353 = vshrl.u32 %v2284, 16
        %v2355 = vrot.slane %v2353, 4
        %v2356 = vshll.u32 %v2284, 16
        %v2358 = vrot.slane %v2356, 5
        %v2359 = vor.u32 %v2355, %v2358
        %v2360 = vrot.slane %v2359, 4
        %v2362 = vshll.u32 %v2292, 16
        %v2364 = vrot.slane %v2362, 5
        %v2365 = vsel %vm643, %v2360, %v2364
        %v2367 = vshrl.u32 %v2285, 16
        %v2369 = vrot.slane %v2367, 4
        %v2370 = vshll.u32 %v2285, 16
        %v2372 = vrot.slane %v2370, 5
        %v2373 = vor.u32 %v2369, %v2372
        %v2374 = vrot.slane %v2373, 4
        %v2376 = vshll.u32 %v2293, 16
        %v2378 = vrot.slane %v2376, 5
        %v2379 = vsel %vm643, %v2374, %v2378
        %v2381 = vshrl.u32 %v2286, 16
        %v2383 = vrot.slane %v2381, 4
        %v2384 = vshll.u32 %v2286, 16
        %v2386 = vrot.slane %v2384, 5
        %v2387 = vor.u32 %v2383, %v2386
        %v2388 = vrot.slane %v2387, 4
        %v2390 = vshll.u32 %v2294, 16
        %v2392 = vrot.slane %v2390, 5
        %v2393 = vsel %vm643, %v2388, %v2392
        %v2395 = vshrl.u32 %v2287, 16
        %v2397 = vrot.slane %v2395, 4
        %v2398 = vshll.u32 %v2287, 16
        %v2400 = vrot.slane %v2398, 5
        %v2401 = vor.u32 %v2397, %v2400
        %v2402 = vrot.slane %v2401, 4
        %v2404 = vshll.u32 %v2295, 16
        %v2406 = vrot.slane %v2404, 5
        %v2407 = vsel %vm643, %v2402, %v2406
        %v2408 = vld [vmem:[%s2279] sm:$0xe]
        %v2409 = vld [vmem:[%s2279 + $0x8] sm:$0xe]
        %v2410 = vld [vmem:[%s2279 + $0x10] sm:$0xe]
        %v2411 = vld [vmem:[%s2279 + $0x18] sm:$0xe]
        %v2412 = vld [vmem:[%s2279 + $0x20] sm:$0xe]
        %v2413 = vld [vmem:[%s2279 + $0x28] sm:$0xe]
        %v2414 = vld [vmem:[%s2279 + $0x30] sm:$0xe]
        %v2415 = vld [vmem:[%s2279 + $0x38] sm:$0xe]
        %v2432 = vrot.slane %v2408, 5
        %v2433 = vrot.slane %v2432, 4
        %v2434 = vrot.slane %v2288, 5
        %v2435 = vsel %vm782, %v2433, %v2434
        %v2436 = vrot.slane %v2409, 5
        %v2437 = vrot.slane %v2436, 4
        %v2438 = vrot.slane %v2289, 5
        %v2439 = vsel %vm782, %v2437, %v2438
        %v2440 = vrot.slane %v2410, 5
        %v2441 = vrot.slane %v2440, 4
        %v2442 = vrot.slane %v2290, 5
        %v2443 = vsel %vm782, %v2441, %v2442
        %v2444 = vrot.slane %v2411, 5
        %v2445 = vrot.slane %v2444, 4
        %v2446 = vrot.slane %v2291, 5
        %v2447 = vsel %vm782, %v2445, %v2446
        %v2448 = vrot.slane %v2412, 5
        %v2449 = vrot.slane %v2448, 4
        %v2450 = vrot.slane %v2292, 5
        %v2451 = vsel %vm782, %v2449, %v2450
        %v2452 = vrot.slane %v2413, 5
        %v2453 = vrot.slane %v2452, 4
        %v2454 = vrot.slane %v2293, 5
        %v2455 = vsel %vm782, %v2453, %v2454
        %v2456 = vrot.slane %v2414, 5
        %v2457 = vrot.slane %v2456, 4
        %v2458 = vrot.slane %v2294, 5
        %v2459 = vsel %vm782, %v2457, %v2458
        %v2460 = vrot.slane %v2415, 5
        %v2461 = vrot.slane %v2460, 4
        %v2462 = vrot.slane %v2295, 5
        %v2463 = vsel %vm782, %v2461, %v2462
        %v2472 = vunpack.c.l.b16 %v1911
        %v2473 = vunpack.c.l.b16 %v1912
        %v2474 = vunpack.c.l.b16 %v1913
        %v2475 = vunpack.c.l.b16 %v1914
        %v2476 = vunpack.c.l.b16 %v1915
        %v2477 = vunpack.c.l.b16 %v1916
        %v2478 = vunpack.c.l.b16 %v1917
        %v2479 = vunpack.c.l.b16 %v1918
        %v2480 = vpack.c.b16 %v2473, %v2472
        %v2481 = vpack.c.b16 %v2475, %v2474
        %v2482 = vpack.c.b16 %v2477, %v2476
        %v2483 = vpack.c.b16 %v2479, %v2478
        %v2484 = vunpack.c.l.b16 %v1940
        %v2485 = vunpack.c.l.b16 %v1954
        %v2486 = vunpack.c.l.b16 %v1968
        %v2487 = vunpack.c.l.b16 %v1982
        %v2488 = vunpack.c.l.b16 %v1996
        %v2489 = vunpack.c.l.b16 %v2010
        %v2490 = vunpack.c.l.b16 %v2024
        %v2491 = vunpack.c.l.b16 %v2038
        %v2492 = vpack.c.b16 %v2485, %v2484
        %v2493 = vpack.c.b16 %v2487, %v2486
        %v2494 = vpack.c.b16 %v2489, %v2488
        %v2495 = vpack.c.b16 %v2491, %v2490
        %2496 = vrot.lane.b32.xlu0 %v2492, 64
        %v2497 = vpop.permute.xlu0 %2496
        %2498 = vrot.lane.b32.xlu0 %v2493, 64
        %v2499 = vpop.permute.xlu0 %2498
        %2500 = vrot.lane.b32.xlu0 %v2494, 64
        %v2501 = vpop.permute.xlu0 %2500
        %2502 = vrot.lane.b32.xlu0 %v2495, 64
        %v2503 = vpop.permute.xlu0 %2502
        %v2504 = vunpack.c.l.b16 %v2066
        %v2505 = vunpack.c.l.b16 %v2070
        %v2506 = vunpack.c.l.b16 %v2074
        %v2507 = vunpack.c.l.b16 %v2078
        %v2508 = vunpack.c.l.b16 %v2082
        %v2509 = vunpack.c.l.b16 %v2086
        %v2510 = vunpack.c.l.b16 %v2090
        %v2511 = vunpack.c.l.b16 %v2094
        %v2512 = vpack.c.b16 %v2505, %v2504
        %v2513 = vpack.c.b16 %v2507, %v2506
        %v2514 = vpack.c.b16 %v2509, %v2508
        %v2515 = vpack.c.b16 %v2511, %v2510
        %v2524 = vunpack.c.l.b16 %v2095
        %v2525 = vunpack.c.l.b16 %v2096
        %v2526 = vunpack.c.l.b16 %v2097
        %v2527 = vunpack.c.l.b16 %v2098
        %v2528 = vunpack.c.l.b16 %v2099
        %v2529 = vunpack.c.l.b16 %v2100
        %v2530 = vunpack.c.l.b16 %v2101
        %v2531 = vunpack.c.l.b16 %v2102
        %v2532 = vpack.c.b16 %v2525, %v2524
        %v2533 = vpack.c.b16 %v2527, %v2526
        %v2534 = vpack.c.b16 %v2529, %v2528
        %v2535 = vpack.c.b16 %v2531, %v2530
        %2536 = vrot.lane.b32.xlu0 %v2532, 64
        %v2537 = vpop.permute.xlu0 %2536
        %2538 = vrot.lane.b32.xlu0 %v2533, 64
        %v2539 = vpop.permute.xlu0 %2538
        %2540 = vrot.lane.b32.xlu0 %v2534, 64
        %v2541 = vpop.permute.xlu0 %2540
        %2542 = vrot.lane.b32.xlu0 %v2535, 64
        %v2543 = vpop.permute.xlu0 %2542
        %v2544 = vunpack.c.l.b16 %v2124
        %v2545 = vunpack.c.l.b16 %v2138
        %v2546 = vunpack.c.l.b16 %v2152
        %v2547 = vunpack.c.l.b16 %v2166
        %v2548 = vunpack.c.l.b16 %v2180
        %v2549 = vunpack.c.l.b16 %v2194
        %v2550 = vunpack.c.l.b16 %v2208
        %v2551 = vunpack.c.l.b16 %v2222
        %v2552 = vpack.c.b16 %v2545, %v2544
        %v2553 = vpack.c.b16 %v2547, %v2546
        %v2554 = vpack.c.b16 %v2549, %v2548
        %v2555 = vpack.c.b16 %v2551, %v2550
        %v2556 = vunpack.c.l.b16 %v2250
        %v2557 = vunpack.c.l.b16 %v2254
        %v2558 = vunpack.c.l.b16 %v2258
        %v2559 = vunpack.c.l.b16 %v2262
        %v2560 = vunpack.c.l.b16 %v2266
        %v2561 = vunpack.c.l.b16 %v2270
        %v2562 = vunpack.c.l.b16 %v2274
        %v2563 = vunpack.c.l.b16 %v2278
        %v2564 = vpack.c.b16 %v2557, %v2556
        %v2565 = vpack.c.b16 %v2559, %v2558
        %v2566 = vpack.c.b16 %v2561, %v2560
        %v2567 = vpack.c.b16 %v2563, %v2562
        %2568 = vrot.lane.b32.xlu0 %v2564, 64
        %v2569 = vpop.permute.xlu0 %2568
        %2570 = vrot.lane.b32.xlu0 %v2565, 64
        %v2571 = vpop.permute.xlu0 %2570
        %2572 = vrot.lane.b32.xlu0 %v2566, 64
        %v2573 = vpop.permute.xlu0 %2572
        %2574 = vrot.lane.b32.xlu0 %v2567, 64
        %v2575 = vpop.permute.xlu0 %2574
        %v2584 = vunpack.c.l.b16 %v2280
        %v2585 = vunpack.c.l.b16 %v2281
        %v2586 = vunpack.c.l.b16 %v2282
        %v2587 = vunpack.c.l.b16 %v2283
        %v2588 = vunpack.c.l.b16 %v2284
        %v2589 = vunpack.c.l.b16 %v2285
        %v2590 = vunpack.c.l.b16 %v2286
        %v2591 = vunpack.c.l.b16 %v2287
        %v2592 = vpack.c.b16 %v2585, %v2584
        %v2593 = vpack.c.b16 %v2587, %v2586
        %v2594 = vpack.c.b16 %v2589, %v2588
        %v2595 = vpack.c.b16 %v2591, %v2590
        %v2596 = vunpack.c.l.b16 %v2309
        %v2597 = vunpack.c.l.b16 %v2323
        %v2598 = vunpack.c.l.b16 %v2337
        %v2599 = vunpack.c.l.b16 %v2351
        %v2600 = vunpack.c.l.b16 %v2365
        %v2601 = vunpack.c.l.b16 %v2379
        %v2602 = vunpack.c.l.b16 %v2393
        %v2603 = vunpack.c.l.b16 %v2407
        %v2604 = vpack.c.b16 %v2597, %v2596
        %v2605 = vpack.c.b16 %v2599, %v2598
        %v2606 = vpack.c.b16 %v2601, %v2600
        %v2607 = vpack.c.b16 %v2603, %v2602
        %2608 = vrot.lane.b32.xlu0 %v2604, 64
        %v2609 = vpop.permute.xlu0 %2608
        %2610 = vrot.lane.b32.xlu0 %v2605, 64
        %v2611 = vpop.permute.xlu0 %2610
        %2612 = vrot.lane.b32.xlu0 %v2606, 64
        %v2613 = vpop.permute.xlu0 %2612
        %2614 = vrot.lane.b32.xlu0 %v2607, 64
        %v2615 = vpop.permute.xlu0 %2614
        %v2616 = vunpack.c.l.b16 %v2435
        %v2617 = vunpack.c.l.b16 %v2439
        %v2618 = vunpack.c.l.b16 %v2443
        %v2619 = vunpack.c.l.b16 %v2447
        %v2620 = vunpack.c.l.b16 %v2451
        %v2621 = vunpack.c.l.b16 %v2455
        %v2622 = vunpack.c.l.b16 %v2459
        %v2623 = vunpack.c.l.b16 %v2463
        %v2624 = vpack.c.b16 %v2617, %v2616
        %v2625 = vpack.c.b16 %v2619, %v2618
        %v2626 = vpack.c.b16 %v2621, %v2620
        %v2627 = vpack.c.b16 %v2623, %v2622
        %v2630 = vsel %vm1377, %v2480, %v2497
        %v2634 = vsel %vm1377, %v2481, %v2499
        %v2638 = vsel %vm1377, %v2482, %v2501
        %v2642 = vsel %vm1377, %v2483, %v2503
        %v2646 = vsel %vm1377, %v2512, %v2537
        %v2650 = vsel %vm1377, %v2513, %v2539
        %v2654 = vsel %vm1377, %v2514, %v2541
        %v2658 = vsel %vm1377, %v2515, %v2543
        %v2662 = vsel %vm1377, %v2552, %v2569
        %v2666 = vsel %vm1377, %v2553, %v2571
        %v2670 = vsel %vm1377, %v2554, %v2573
        %v2674 = vsel %vm1377, %v2555, %v2575
        %v2678 = vsel %vm1377, %v2592, %v2609
        %v2682 = vsel %vm1377, %v2593, %v2611
        %v2686 = vsel %vm1377, %v2594, %v2613
        %v2690 = vsel %vm1377, %v2595, %v2615
        %v2692 = vld [vmem:[%s5] sm:$0xf]
        %v2693 = vld [vmem:[%s5 + $0x4] sm:$0xf]
        %v2694 = vld [vmem:[%s5 + $0x8] sm:$0xf]
        %v2695 = vld [vmem:[%s5 + $0xc] sm:$0xf]
        %v2696 = vld [vmem:[%s5 + $0x10] sm:$0xf]
        %v2697 = vld [vmem:[%s5 + $0x14] sm:$0xf]
        %v2698 = vld [vmem:[%s5 + $0x18] sm:$0xf]
        %v2699 = vld [vmem:[%s5 + $0x1c] sm:$0xf]
        %v2700 = vld [vmem:[%s5 + $0x20] sm:$0xf]
        %v2701 = vld [vmem:[%s5 + $0x24] sm:$0xf]
        %v2702 = vld [vmem:[%s5 + $0x28] sm:$0xf]
        %v2703 = vld [vmem:[%s5 + $0x2c] sm:$0xf]
        %v2704 = vld [vmem:[%s5 + $0x30] sm:$0xf]
        %v2705 = vld [vmem:[%s5 + $0x34] sm:$0xf]
        %v2706 = vld [vmem:[%s5 + $0x38] sm:$0xf]
        %v2707 = vld [vmem:[%s5 + $0x3c] sm:$0xf]
        %v2708 = vld [vmem:[%s5 + $0x40] sm:$0xf]
        %v2709 = vld [vmem:[%s5 + $0x44] sm:$0xf]
        %v2710 = vld [vmem:[%s5 + $0x48] sm:$0xf]
        %v2711 = vld [vmem:[%s5 + $0x4c] sm:$0xf]
        %v2712 = vld [vmem:[%s5 + $0x50] sm:$0xf]
        %v2713 = vld [vmem:[%s5 + $0x54] sm:$0xf]
        %v2714 = vld [vmem:[%s5 + $0x58] sm:$0xf]
        %v2715 = vld [vmem:[%s5 + $0x5c] sm:$0xf]
        %v2716 = vld [vmem:[%s5 + $0x60] sm:$0xf]
        %v2717 = vld [vmem:[%s5 + $0x64] sm:$0xf]
        %v2718 = vld [vmem:[%s5 + $0x68] sm:$0xf]
        %v2719 = vld [vmem:[%s5 + $0x6c] sm:$0xf]
        %v2720 = vld [vmem:[%s5 + $0x70] sm:$0xf]
        %v2721 = vld [vmem:[%s5 + $0x74] sm:$0xf]
        %v2722 = vld [vmem:[%s5 + $0x78] sm:$0xf]
        %v2723 = vld [vmem:[%s5 + $0x7c] sm:$0xf]
        %v2724 = vld [vmem:[%s5 + $0x80] sm:$0xf]
        %v2725 = vld [vmem:[%s5 + $0x84] sm:$0xf]
        %v2726 = vld [vmem:[%s5 + $0x88] sm:$0xf]
        %v2727 = vld [vmem:[%s5 + $0x8c] sm:$0xf]
        %v2728 = vld [vmem:[%s5 + $0x90] sm:$0xf]
        %v2729 = vld [vmem:[%s5 + $0x94] sm:$0xf]
        %v2730 = vld [vmem:[%s5 + $0x98] sm:$0xf]
        %v2731 = vld [vmem:[%s5 + $0x9c] sm:$0xf]
        %v2732 = vld [vmem:[%s5 + $0xa0] sm:$0xf]
        %v2733 = vld [vmem:[%s5 + $0xa4] sm:$0xf]
        %v2734 = vld [vmem:[%s5 + $0xa8] sm:$0xf]
        %v2735 = vld [vmem:[%s5 + $0xac] sm:$0xf]
        %v2736 = vld [vmem:[%s5 + $0xb0] sm:$0xf]
        %v2737 = vld [vmem:[%s5 + $0xb4] sm:$0xf]
        %v2738 = vld [vmem:[%s5 + $0xb8] sm:$0xf]
        %v2739 = vld [vmem:[%s5 + $0xbc] sm:$0xf]
        %v2740 = vld [vmem:[%s5 + $0xc0] sm:$0xf]
        %v2741 = vld [vmem:[%s5 + $0xc4] sm:$0xf]
        %v2742 = vld [vmem:[%s5 + $0xc8] sm:$0xf]
        %v2743 = vld [vmem:[%s5 + $0xcc] sm:$0xf]
        %v2744 = vld [vmem:[%s5 + $0xd0] sm:$0xf]
        %v2745 = vld [vmem:[%s5 + $0xd4] sm:$0xf]
        %v2746 = vld [vmem:[%s5 + $0xd8] sm:$0xf]
        %v2747 = vld [vmem:[%s5 + $0xdc] sm:$0xf]
        %v2748 = vld [vmem:[%s5 + $0xe0] sm:$0xf]
        %v2749 = vld [vmem:[%s5 + $0xe4] sm:$0xf]
        %v2750 = vld [vmem:[%s5 + $0xe8] sm:$0xf]
        %v2751 = vld [vmem:[%s5 + $0xec] sm:$0xf]
        %v2752 = vld [vmem:[%s5 + $0xf0] sm:$0xf]
        %v2753 = vld [vmem:[%s5 + $0xf4] sm:$0xf]
        %v2754 = vld [vmem:[%s5 + $0xf8] sm:$0xf]
        %v2755 = vld [vmem:[%s5 + $0xfc] sm:$0xf]
        %v2756 = vld [vmem:[%s5 + $0x100] sm:$0xf]
        %v2757 = vld [vmem:[%s5 + $0x104] sm:$0xf]
        %v2758 = vld [vmem:[%s5 + $0x108] sm:$0xf]
        %v2759 = vld [vmem:[%s5 + $0x10c] sm:$0xf]
        %v2760 = vld [vmem:[%s5 + $0x110] sm:$0xf]
        %v2761 = vld [vmem:[%s5 + $0x114] sm:$0xf]
        %v2762 = vld [vmem:[%s5 + $0x118] sm:$0xf]
        %v2763 = vld [vmem:[%s5 + $0x11c] sm:$0xf]
        %v2764 = vld [vmem:[%s6] sm:$0x1]
        %v2766 = vlaneseq
        %v2767 = vshrl.u32 %v2766, 7
        %v2768 = vsub.s32 0, %v2767
        %v2769 = vrot.slane %v2764, %v2768
        %v2843 = vunpack.c.l.b16 %v2692
        %v2844 = vunpack.c.l.b16 %v2693
        %v2845 = vunpack.c.l.b16 %v2694
        %v2846 = vunpack.c.l.b16 %v2695
        %v2847 = vunpack.c.l.b16 %v2696
        %v2848 = vunpack.c.l.b16 %v2697
        %v2849 = vunpack.c.l.b16 %v2698
        %v2850 = vunpack.c.l.b16 %v2699
        %v2851 = vunpack.c.l.b16 %v2700
        %v2852 = vunpack.c.l.b16 %v2701
        %v2853 = vunpack.c.l.b16 %v2702
        %v2854 = vunpack.c.l.b16 %v2703
        %v2855 = vunpack.c.l.b16 %v2704
        %v2856 = vunpack.c.l.b16 %v2705
        %v2857 = vunpack.c.l.b16 %v2706
        %v2858 = vunpack.c.l.b16 %v2707
        %v2859 = vunpack.c.l.b16 %v2708
        %v2860 = vunpack.c.l.b16 %v2709
        %v2861 = vunpack.c.l.b16 %v2710
        %v2862 = vunpack.c.l.b16 %v2711
        %v2863 = vunpack.c.l.b16 %v2712
        %v2864 = vunpack.c.l.b16 %v2713
        %v2865 = vunpack.c.l.b16 %v2714
        %v2866 = vunpack.c.l.b16 %v2715
        %v2867 = vunpack.c.l.b16 %v2716
        %v2868 = vunpack.c.l.b16 %v2717
        %v2869 = vunpack.c.l.b16 %v2718
        %v2870 = vunpack.c.l.b16 %v2719
        %v2871 = vunpack.c.l.b16 %v2720
        %v2872 = vunpack.c.l.b16 %v2721
        %v2873 = vunpack.c.l.b16 %v2722
        %v2874 = vunpack.c.l.b16 %v2723
        %v2875 = vunpack.c.l.b16 %v2724
        %v2876 = vunpack.c.l.b16 %v2725
        %v2877 = vunpack.c.l.b16 %v2726
        %v2878 = vunpack.c.l.b16 %v2727
        %v2879 = vunpack.c.l.b16 %v2728
        %v2880 = vunpack.c.l.b16 %v2729
        %v2881 = vunpack.c.l.b16 %v2730
        %v2882 = vunpack.c.l.b16 %v2731
        %v2883 = vunpack.c.l.b16 %v2732
        %v2884 = vunpack.c.l.b16 %v2733
        %v2885 = vunpack.c.l.b16 %v2734
        %v2886 = vunpack.c.l.b16 %v2735
        %v2887 = vunpack.c.l.b16 %v2736
        %v2888 = vunpack.c.l.b16 %v2737
        %v2889 = vunpack.c.l.b16 %v2738
        %v2890 = vunpack.c.l.b16 %v2739
        %v2891 = vunpack.c.l.b16 %v2740
        %v2892 = vunpack.c.l.b16 %v2741
        %v2893 = vunpack.c.l.b16 %v2742
        %v2894 = vunpack.c.l.b16 %v2743
        %v2895 = vunpack.c.l.b16 %v2744
        %v2896 = vunpack.c.l.b16 %v2745
        %v2897 = vunpack.c.l.b16 %v2746
        %v2898 = vunpack.c.l.b16 %v2747
        %v2899 = vunpack.c.l.b16 %v2748
        %v2900 = vunpack.c.l.b16 %v2749
        %v2901 = vunpack.c.l.b16 %v2750
        %v2902 = vunpack.c.l.b16 %v2751
        %v2903 = vunpack.c.l.b16 %v2752
        %v2904 = vunpack.c.l.b16 %v2753
        %v2905 = vunpack.c.l.b16 %v2754
        %v2906 = vunpack.c.l.b16 %v2755
        %v2907 = vunpack.c.l.b16 %v2756
        %v2908 = vunpack.c.l.b16 %v2757
        %v2909 = vunpack.c.l.b16 %v2758
        %v2910 = vunpack.c.l.b16 %v2759
        %v2911 = vunpack.c.l.b16 %v2760
        %v2912 = vunpack.c.l.b16 %v2761
        %v2913 = vunpack.c.l.b16 %v2762
        %v2914 = vunpack.c.l.b16 %v2763
        %v2915 = vpack.c.b16 %v2844, %v2843
        %v2916 = vpack.c.b16 %v2846, %v2845
        %v2917 = vpack.c.b16 %v2848, %v2847
        %v2918 = vpack.c.b16 %v2850, %v2849
        %v2919 = vpack.c.b16 %v2852, %v2851
        %v2920 = vpack.c.b16 %v2854, %v2853
        %v2921 = vpack.c.b16 %v2856, %v2855
        %v2922 = vpack.c.b16 %v2858, %v2857
        %v2923 = vpack.c.b16 %v2860, %v2859
        %v2924 = vpack.c.b16 %v2862, %v2861
        %v2925 = vpack.c.b16 %v2864, %v2863
        %v2926 = vpack.c.b16 %v2866, %v2865
        %v2927 = vpack.c.b16 %v2868, %v2867
        %v2928 = vpack.c.b16 %v2870, %v2869
        %v2929 = vpack.c.b16 %v2872, %v2871
        %v2930 = vpack.c.b16 %v2874, %v2873
        %v2931 = vpack.c.b16 %v2876, %v2875
        %v2932 = vpack.c.b16 %v2878, %v2877
        %v2933 = vpack.c.b16 %v2880, %v2879
        %v2934 = vpack.c.b16 %v2882, %v2881
        %v2935 = vpack.c.b16 %v2884, %v2883
        %v2936 = vpack.c.b16 %v2886, %v2885
        %v2937 = vpack.c.b16 %v2888, %v2887
        %v2938 = vpack.c.b16 %v2890, %v2889
        %v2939 = vpack.c.b16 %v2892, %v2891
        %v2940 = vpack.c.b16 %v2894, %v2893
        %v2941 = vpack.c.b16 %v2896, %v2895
        %v2942 = vpack.c.b16 %v2898, %v2897
        %v2943 = vpack.c.b16 %v2900, %v2899
        %v2944 = vpack.c.b16 %v2902, %v2901
        %v2945 = vpack.c.b16 %v2904, %v2903
        %v2946 = vpack.c.b16 %v2906, %v2905
        %v2947 = vpack.c.b16 %v2908, %v2907
        %v2948 = vpack.c.b16 %v2910, %v2909
        %v2949 = vpack.c.b16 %v2912, %v2911
        %v2950 = vpack.c.b16 %v2914, %v2913
        %v2988 = vsel %vm1377, %v2624, 0
        %v2991 = vsel %vm1377, %v2625, 0
        %v2994 = vsel %vm1377, %v2626, 0
        %v2997 = vsel %vm1377, %v2627, 0
        %2999 = vmatprep.subr.bf16.mxu0 0
        %3000 = vmatpush1.bf16.msra.mxu0 %v2922
        %3001 = vmatprep.subr.bf16.mxu0 0
        %3002 = vmatpush1.bf16.msra.mxu0 %v2921
        %3003 = vmatprep.subr.bf16.mxu0 0
        %3004 = vmatpush1.bf16.msra.mxu0 %v2920
        %3005 = vmatprep.subr.bf16.mxu0 0
        %3006 = vmatpush1.bf16.msra.mxu0 %v2919
        %3007 = vmatprep.subr.bf16.mxu0 0
        %3008 = vmatpush1.bf16.msra.mxu0 %v2918
        %3009 = vmatprep.subr.bf16.mxu0 0
        %3010 = vmatpush1.bf16.msra.mxu0 %v2917
        %3011 = vmatprep.subr.bf16.mxu0 0
        %3012 = vmatpush1.bf16.msra.mxu0 %v2916
        %3013 = vmatprep.subr.bf16.mxu0 0
        %3014 = vmatpush1.bf16.msra.mxu0 %v2915
        %3015 = vmatprep.subr.bf16.mxu0 0
        %3016 = vmatpush2.bf16.msra.mxu0 %v2930
        %3017 = vmatprep.subr.bf16.mxu0 0
        %3018 = vmatpush2.bf16.msra.mxu0 %v2929
        %3019 = vmatprep.subr.bf16.mxu0 0
        %3020 = vmatpush2.bf16.msra.mxu0 %v2928
        %3021 = vmatprep.subr.bf16.mxu0 0
        %3022 = vmatpush2.bf16.msra.mxu0 %v2927
        %3023 = vmatprep.subr.bf16.mxu0 0
        %3024 = vmatpush2.bf16.msra.mxu0 %v2926
        %3025 = vmatprep.subr.bf16.mxu0 0
        %3026 = vmatpush2.bf16.msra.mxu0 %v2925
        %3027 = vmatprep.subr.bf16.mxu0 0
        %3028 = vmatpush2.bf16.msra.mxu0 %v2924
        %3029 = vmatprep.subr.bf16.mxu0 0
        %3030 = vmatpush2.bf16.msra.mxu0 %v2923
        %3031 = vmatprep.mubr.bf16.mxu0 %v2646
        %3032 = vmatmul.mubr.bf16.gmra.mxu0 %v2630
        %v3033 = vpop.f32.mrf.mxu0
        %v3034 = vadd.f32 %v2769, %v3033
        %v3035 = vpop.f32.mrf.mxu0
        %v3036 = vpop.f32.mrf.mxu0
        %v3037 = vadd.f32 %v2769, %v3036
        %v3038 = vpop.f32.mrf.mxu0
        %3039 = vmatprep.mubr.bf16.mxu0 %v2650
        %3040 = vmatmul.mubr.bf16.gmra.mxu0 %v2634
        %v3041 = vpop.f32.mrf.mxu0
        %v3042 = vadd.f32 %v2769, %v3041
        %v3043 = vpop.f32.mrf.mxu0
        %v3044 = vpop.f32.mrf.mxu0
        %v3045 = vadd.f32 %v2769, %v3044
        %v3046 = vpop.f32.mrf.mxu0
        %3047 = vmatprep.mubr.bf16.mxu0 %v2654
        %3048 = vmatmul.mubr.bf16.gmra.mxu0 %v2638
        %v3049 = vpop.f32.mrf.mxu0
        %v3050 = vadd.f32 %v2769, %v3049
        %v3051 = vpop.f32.mrf.mxu0
        %v3052 = vpop.f32.mrf.mxu0
        %v3053 = vadd.f32 %v2769, %v3052
        %v3054 = vpop.f32.mrf.mxu0
        %3055 = vmatprep.mubr.bf16.mxu0 %v2658
        %3056 = vmatmul.mubr.bf16.gmra.mxu0 %v2642
        %v3057 = vpop.f32.mrf.mxu0
        %v3058 = vadd.f32 %v2769, %v3057
        %v3059 = vpop.f32.mrf.mxu0
        %v3060 = vpop.f32.mrf.mxu0
        %v3061 = vadd.f32 %v2769, %v3060
        %v3062 = vpop.f32.mrf.mxu0
        %3063 = vdwg.mxu0
        %3064 = vmatprep.subr.bf16.mxu0 0
        %3065 = vmatpush1.bf16.msra.mxu0 %v2938
        %3066 = vmatprep.subr.bf16.mxu0 0
        %3067 = vmatpush1.bf16.msra.mxu0 %v2937
        %3068 = vmatprep.subr.bf16.mxu0 0
        %3069 = vmatpush1.bf16.msra.mxu0 %v2936
        %3070 = vmatprep.subr.bf16.mxu0 0
        %3071 = vmatpush1.bf16.msra.mxu0 %v2935
        %3072 = vmatprep.subr.bf16.mxu0 0
        %3073 = vmatpush1.bf16.msra.mxu0 %v2934
        %3074 = vmatprep.subr.bf16.mxu0 0
        %3075 = vmatpush1.bf16.msra.mxu0 %v2933
        %3076 = vmatprep.subr.bf16.mxu0 0
        %3077 = vmatpush1.bf16.msra.mxu0 %v2932
        %3078 = vmatprep.subr.bf16.mxu0 0
        %3079 = vmatpush1.bf16.msra.mxu0 %v2931
        %3080 = vmatprep.subr.bf16.mxu0 0
        %3081 = vmatpush2.bf16.msra.mxu0 %v2946
        %3082 = vmatprep.subr.bf16.mxu0 0
        %3083 = vmatpush2.bf16.msra.mxu0 %v2945
        %3084 = vmatprep.subr.bf16.mxu0 0
        %3085 = vmatpush2.bf16.msra.mxu0 %v2944
        %3086 = vmatprep.subr.bf16.mxu0 0
        %3087 = vmatpush2.bf16.msra.mxu0 %v2943
        %3088 = vmatprep.subr.bf16.mxu0 0
        %3089 = vmatpush2.bf16.msra.mxu0 %v2942
        %3090 = vmatprep.subr.bf16.mxu0 0
        %3091 = vmatpush2.bf16.msra.mxu0 %v2941
        %3092 = vmatprep.subr.bf16.mxu0 0
        %3093 = vmatpush2.bf16.msra.mxu0 %v2940
        %3094 = vmatprep.subr.bf16.mxu0 0
        %3095 = vmatpush2.bf16.msra.mxu0 %v2939
        %3096 = vmatprep.mubr.bf16.mxu0 %v2678
        %3097 = vmatmul.mubr.bf16.gmra.mxu0 %v2662
        %v3098 = vpop.f32.mrf.mxu0
        %v3099 = vadd.f32 %v3034, %v3098
        %v3100 = vpop.f32.mrf.mxu0
        %v3101 = vpop.f32.mrf.mxu0
        %v3102 = vadd.f32 %v3037, %v3101
        %v3103 = vpop.f32.mrf.mxu0
        %3104 = vmatprep.mubr.bf16.mxu0 %v2682
        %3105 = vmatmul.mubr.bf16.gmra.mxu0 %v2666
        %v3106 = vpop.f32.mrf.mxu0
        %v3107 = vadd.f32 %v3042, %v3106
        %v3108 = vpop.f32.mrf.mxu0
        %v3109 = vpop.f32.mrf.mxu0
        %v3110 = vadd.f32 %v3045, %v3109
        %v3111 = vpop.f32.mrf.mxu0
        %3112 = vmatprep.mubr.bf16.mxu0 %v2686
        %3113 = vmatmul.mubr.bf16.gmra.mxu0 %v2670
        %v3114 = vpop.f32.mrf.mxu0
        %v3115 = vadd.f32 %v3050, %v3114
        %v3116 = vpop.f32.mrf.mxu0
        %v3117 = vpop.f32.mrf.mxu0
        %v3118 = vadd.f32 %v3053, %v3117
        %v3119 = vpop.f32.mrf.mxu0
        %3120 = vmatprep.mubr.bf16.mxu0 %v2690
        %3121 = vmatmul.mubr.bf16.gmra.mxu0 %v2674
        %v3122 = vpop.f32.mrf.mxu0
        %v3123 = vadd.f32 %v3058, %v3122
        %v3124 = vpop.f32.mrf.mxu0
        %v3125 = vpop.f32.mrf.mxu0
        %v3126 = vadd.f32 %v3061, %v3125
        %v3127 = vpop.f32.mrf.mxu0
        %3128 = vdwg.mxu0
        %3129 = vmatprep.subr.bf16.mxu0 0
        %3130 = vmatpush1.bf16.msra.mxu0 0
        %3131 = vmatprep.subr.bf16.mxu0 0
        %3132 = vmatpush1.bf16.msra.mxu0 0
        %3133 = vmatprep.subr.bf16.mxu0 0
        %3134 = vmatpush1.bf16.msra.mxu0 0
        %3135 = vmatprep.subr.bf16.mxu0 0
        %3136 = vmatpush1.bf16.msra.mxu0 0
        %3137 = vmatprep.subr.bf16.mxu0 0
        %3138 = vmatpush1.bf16.msra.mxu0 %v2950
        %3139 = vmatprep.subr.bf16.mxu0 0
        %3140 = vmatpush1.bf16.msra.mxu0 %v2949
        %3141 = vmatprep.subr.bf16.mxu0 0
        %3142 = vmatpush1.bf16.msra.mxu0 %v2948
        %3143 = vmatprep.subr.bf16.mxu0 0
        %3144 = vmatpush1.bf16.msra.mxu0 %v2947
        %3145 = vmatprep.subr.bf16.mxu0 0
        %3146 = vmatpush2.bf16.msra.mxu0 0
        %3147 = vmatprep.subr.bf16.mxu0 0
        %3148 = vmatpush2.bf16.msra.mxu0 0
        %3149 = vmatprep.subr.bf16.mxu0 0
        %3150 = vmatpush2.bf16.msra.mxu0 0
        %3151 = vmatprep.subr.bf16.mxu0 0
        %3152 = vmatpush2.bf16.msra.mxu0 0
        %3153 = vmatprep.subr.bf16.mxu0 0
        %3154 = vmatpush2.bf16.msra.mxu0 0
        %3155 = vmatprep.subr.bf16.mxu0 0
        %3156 = vmatpush2.bf16.msra.mxu0 0
        %3157 = vmatprep.subr.bf16.mxu0 0
        %3158 = vmatpush2.bf16.msra.mxu0 0
        %3159 = vmatprep.subr.bf16.mxu0 0
        %3160 = vmatpush2.bf16.msra.mxu0 0
        %3161 = vmatprep.mubr.bf16.mxu0 0
        %3162 = vmatmul.mubr.bf16.gmra.mxu0 %v2988
        %v3163 = vpop.f32.mrf.mxu0
        %v3164 = vadd.f32 %v3099, %v3163
        %v3165 = vpop.f32.mrf.mxu0
        %v3166 = vpop.f32.mrf.mxu0
        %v3167 = vadd.f32 %v3102, %v3166
        %v3168 = vpop.f32.mrf.mxu0
        %3169 = vmatprep.mubr.bf16.mxu0 0
        %3170 = vmatmul.mubr.bf16.gmra.mxu0 %v2991
        %v3171 = vpop.f32.mrf.mxu0
        %v3172 = vadd.f32 %v3107, %v3171
        %v3173 = vpop.f32.mrf.mxu0
        %v3174 = vpop.f32.mrf.mxu0
        %v3175 = vadd.f32 %v3110, %v3174
        %v3176 = vpop.f32.mrf.mxu0
        %3177 = vmatprep.mubr.bf16.mxu0 0
        %3178 = vmatmul.mubr.bf16.gmra.mxu0 %v2994
        %v3179 = vpop.f32.mrf.mxu0
        %v3180 = vadd.f32 %v3115, %v3179
        %v3181 = vpop.f32.mrf.mxu0
        %v3182 = vpop.f32.mrf.mxu0
        %v3183 = vadd.f32 %v3118, %v3182
        %v3184 = vpop.f32.mrf.mxu0
        %3185 = vmatprep.mubr.bf16.mxu0 0
        %3186 = vmatmul.mubr.bf16.gmra.mxu0 %v2997
        %v3187 = vpop.f32.mrf.mxu0
        %v3188 = vadd.f32 %v3123, %v3187
        %v3189 = vpop.f32.mrf.mxu0
        %v3190 = vpop.f32.mrf.mxu0
        %v3191 = vadd.f32 %v3126, %v3190
        %v3192 = vpop.f32.mrf.mxu0
        %3193 = vdwg.mxu0
        %v3194 = vadd.f32 %v3164, %v398
        %v3195 = vadd.f32 %v3167, %v402
        %v3196 = vadd.f32 %v3172, %v408
        %v3197 = vadd.f32 %v3175, %v412
        %v3198 = vadd.f32 %v3180, %v418
        %v3199 = vadd.f32 %v3183, %v422
        %v3200 = vadd.f32 %v3188, %v428
        %v3201 = vadd.f32 %v3191, %v432
        %v3202 = vmax.f32 %v3194, 0.0
        %v3203 = vmax.f32 %v3195, 0.0
        %v3204 = vmax.f32 %v3196, 0.0
        %v3205 = vmax.f32 %v3197, 0.0
        %v3206 = vmax.f32 %v3198, 0.0
        %v3207 = vmax.f32 %v3199, 0.0
        %v3208 = vmax.f32 %v3200, 0.0
        %v3209 = vmax.f32 %v3201, 0.0
        %3210 = vst [vmem:[%s271] sm:$0xff] %v3202
        %3211 = vst [vmem:[%s271 + $0x8] sm:$0xff] %v3203
        %3212 = vst [vmem:[%s271 + $0x10] sm:$0xff] %v3204
        %3213 = vst [vmem:[%s271 + $0x18] sm:$0xff] %v3205
        %3214 = vst [vmem:[%s271 + $0x20] sm:$0xff] %v3206
        %3215 = vst [vmem:[%s271 + $0x28] sm:$0xff] %v3207
        %3216 = vst [vmem:[%s271 + $0x30] sm:$0xff] %v3208
        %3217 = vst [vmem:[%s271 + $0x38] sm:$0xff] %v3209
        %s3218 = sand.u32 %s181, 1
        %s3219 = scalar_lea.sflag [#allocation5], %s3218
        %s3220 = sand.u32 %s181, 1
        %s3221 = smul.addr %s3220, 64
        %s3222 = scalar_lea.vmem [#allocation4], %s3221
        // Predicated region
        $region49: #{detail_path_forward.1} parent=47 // pred_check
          %p3223 = pneg %p191
        $region50: #{detail_path_forward.1} parent=47 // pred_check_branch
          %3225 = sbr.rel (%p3223) target = $region52
        $region51: #{detail_path_forward.1} parent=47 // pred_region
          %s3227 = ssub.s32 1024, 1024
          %3228 = vsyncadd %s3219, %s3227
          %s3229 = smul.addr %s21, 8
          %s3230 = smul.addr %s3229, 128
          %s3231 = scalar_lea.hbm %s7, %s3230
          %s3232 = sshll.u32 %s3222, 4
          %s3233 = int_to_ptr.vmem [resolvable:$true] %s3232
          %3238 = dma.vmem_to_hbm [thread:$0]  %s3233, 1024, %s3231, %s3219, 128, 128, 8
        $region52: #{detail_path_forward.1} parent=47 // pred_fallthru
          _
      $region48: #{detail_path_forward.1} parent=5 // pred_fallthru
        _
      %p3239 = scmp.le.s32.totalorder 2, %s16
      // Predicated region
      $region53: #{detail_path_forward.1} parent=5 // pred_check
        %p3240 = pneg %p3239
      $region54: #{detail_path_forward.1} parent=5 // pred_check_branch
        %3242 = sbr.rel (%p3240) target = $region56
      $region55: #{detail_path_forward.1} parent=5 // pred_region
        %s3243 = ssub.s32 %s16, 2
        // Predicated region
        $region57: #{detail_path_forward.1} parent=55 // pred_check
          %p3244 = pneg %p197
        $region58: #{detail_path_forward.1} parent=55 // pred_check_branch
          %3246 = sbr.rel (%p3244) target = $region60
        $region59: #{detail_path_forward.1} parent=55 // pred_region
          %s3247 = sand.u32 %s182, 1
          %s3248 = scalar_lea.sflag [#allocation5], %s3247
          %s3249 = sand.u32 %s182, 1
          %s3250 = smul.addr %s3249, 64
          %s3251 = scalar_lea.vmem [#allocation4], %s3250
          %3252 = dma.done %s3248, 1024
        $region60: #{detail_path_forward.1} parent=55 // pred_fallthru
          _
      $region56: #{detail_path_forward.1} parent=5 // pred_fallthru
        _
    $region6: #{detail_path_forward.1} parent=1 // loop_footer
      %s20 = sadd.s32 1, %s16
    $region7: #{detail_path_forward.1} parent=1 // loop_footer_branch
      %15 = sbr.rel target = $region3
    $region8: #{detail_path_forward.1} parent=1 // loop_exit
      _
    %3253 = vsyncpa [#allocation5], 1
    %s3254 = scalar_lea.sflag [#allocation5], 1
    %3255 = vsyncpa %s3254, 1

</llo_original>
